<compile_context>
chip_gen: v6e
topology: v6e:2x2x1
jax: 0.10.0
libtpu: 0.0.40
codegen_flags: <defaults>
</compile_context>

<pallas_src>
import functools

import jax
import jax.numpy as jnp
import numpy as np
from jax import lax
from jax.experimental import pallas as pl
from jax.experimental.pallas import tpu as pltpu


def mhsa_kernel(x_ref, w_ref, b_ref, gamma_ref, out_ref, attn_ref,
                *, d_qk_pad, d_v, use_bf16_mxu):
    # x_ref:    (1, C, N)     input for batch b; resident across the head axis
    # w_ref:    (1, P, C)     this head's fused [Wq_pad; Wk_pad; Wv], P = 2*d_qk_pad + d_v
    # b_ref:    (1, P, 1)     this head's fused bias rows
    # gamma_ref: SMEM (1,)
    # out_ref:  (1, d_v, N)   gamma * head_out + x[this head's channel rows]
    # attn_ref: (1, 1, N, N)  this head's softmax attention map
    hd = pl.program_id(1)
    x = x_ref[0]                                             # (C, N) f32

    # 1x1 conv == channel matmul; ONE small MXU matmul gives q, k, v of this head.
    qkv = jnp.dot(w_ref[0], x, preferred_element_type=jnp.float32) + b_ref[0]
    qh = qkv[:d_qk_pad]                                      # (d_qk_pad, N), padded rows = 0
    kh = qkv[d_qk_pad:2 * d_qk_pad]                          # (d_qk_pad, N)
    vh = qkv[2 * d_qk_pad:]                                  # (d_v, N)

    qh_mm = qh.astype(jnp.bfloat16) if use_bf16_mxu else qh
    kh_mm = kh.astype(jnp.bfloat16) if use_bf16_mxu else kh
    # qk[i, j] = sum_d q[d, i] * k[d, j]  (queries^T @ keys); zero-padded rows add 0.
    qk = lax.dot_general(qh_mm, kh_mm, (((0,), (0,)), ((), ())),
                         preferred_element_type=jnp.float32)            # (N, N)

    # Softmax over last dim (f32 reductions; exp + approx reciprocal on EUP).
    # TODO(synk): for large N (N^2 blocks approaching VMEM, esp. v7x's 64 MiB)
    # add a key-axis grid dimension with an online-softmax (flash) accumulator
    # instead of materializing the full (N, N) block.
    qk_max = jnp.max(qk, axis=-1, keepdims=True)
    e = jnp.exp(qk - qk_max)
    attn = e * pl.reciprocal(jnp.sum(e, axis=-1, keepdims=True), approx=True)
    attn_ref[0, 0] = attn.astype(attn_ref.dtype)             # lane-dense store (N mult of 128)

    vh_mm = vh.astype(jnp.bfloat16) if use_bf16_mxu else vh
    attn_mm = attn.astype(jnp.bfloat16) if use_bf16_mxu else attn
    # head_out[c, i] = sum_j v[c, j] * attn[i, j]   (values @ attention^T)
    head_out = lax.dot_general(vh_mm, attn_mm, (((1,), (1,)), ((), ())),
                               preferred_element_type=jnp.float32)      # (d_v, N)

    # Residual slice of the resident x tile for this head's channel rows.
    x_res = x_ref[0, pl.ds(pl.multiple_of(hd * d_v, 8), d_v), :]
    out_ref[0] = (gamma_ref[0] * head_out + x_res).astype(out_ref.dtype)


@functools.partial(jax.jit,
                   static_argnames=("num_heads", "k", "use_bf16_mxu", "attn_dtype"))
def mhsa_forward(x, wq, bq, wk, bk, wv, bv, gamma, *, num_heads=4, k=2,
                 use_bf16_mxu=True, attn_dtype=jnp.bfloat16):
    """Pallas forward of MultiHeadSelfAttention.

    x: (B, C, W, H) float32 (NCHW, like PyTorch)
    wq/wk: (C//k, C), bq/bk: (C//k,)
    wv:    (C, C),    bv:    (C,)
    gamma: (1,)
    Returns (output (B, C, W, H) float32, attention (B, h, N, N) attn_dtype), N = W*H.
    """
    B, C, W, H = x.shape
    N = W * H
    h = num_heads
    d_qk = C // k // h
    d_v = C // h
    assert (C // k) % h == 0 and C % h == 0
    # Per-head output rows must be sublane (8) aligned for the (1, d_v, N) out block.
    assert d_v % 8 == 0 or h == 1, "d_v must be a multiple of 8 (or h == 1)"
    d_qk_pad = max(8, -(-d_qk // 8) * 8)          # pad q/k rows up to a sublane multiple
    P = 2 * d_qk_pad + d_v

    x_flat = x.reshape(B, C, N)

    # Pack per-head fused [Wq; Wk; Wv] weights (and biases), zero-padding the d_qk
    # rows to d_qk_pad so every per-head slice is a full sublane tile. Zero rows
    # produce zero q/k rows which contribute 0 to q.k -> bit-identical results.
    wq_h = jnp.pad(wq.reshape(h, d_qk, C), ((0, 0), (0, d_qk_pad - d_qk), (0, 0)))
    wk_h = jnp.pad(wk.reshape(h, d_qk, C), ((0, 0), (0, d_qk_pad - d_qk), (0, 0)))
    wv_h = wv.reshape(h, d_v, C)
    w_heads = jnp.concatenate([wq_h, wk_h, wv_h], axis=1)                 # (h, P, C)

    bq_h = jnp.pad(bq.reshape(h, d_qk), ((0, 0), (0, d_qk_pad - d_qk)))
    bk_h = jnp.pad(bk.reshape(h, d_qk), ((0, 0), (0, d_qk_pad - d_qk)))
    bv_h = bv.reshape(h, d_v)
    b_heads = jnp.concatenate([bq_h, bk_h, bv_h], axis=1)[..., None]      # (h, P, 1)

    kernel = functools.partial(mhsa_kernel, d_qk_pad=d_qk_pad, d_v=d_v,
                               use_bf16_mxu=use_bf16_mxu)

    attn_bytes = np.dtype(attn_dtype).itemsize
    cost = pl.CostEstimate(
        flops=2 * B * h * (P * C * N + N * N * d_qk_pad + N * N * d_v),
        transcendentals=B * h * N * N,
        bytes_accessed=(2 * B * C * N * 4                  # x in + out
                        + B * h * N * N * attn_bytes       # attention maps (dominant)
                        + h * P * (C + 1) * 4))            # fused weights/bias

    out, attn = pl.pallas_call(
        kernel,
        grid=(B, h),
        in_specs=[
            pl.BlockSpec((1, C, N), lambda b, hd: (b, 0, 0)),     # x: resident across heads
            pl.BlockSpec((1, P, C), lambda b, hd: (hd, 0, 0)),    # this head's fused weights
            pl.BlockSpec((1, P, 1), lambda b, hd: (hd, 0, 0)),    # this head's fused bias
            pl.BlockSpec(memory_space=pltpu.MemorySpace.SMEM),    # gamma scalar
        ],
        out_specs=[
            pl.BlockSpec((1, d_v, N), lambda b, hd: (b, hd, 0)),  # head's channel rows of output
            pl.BlockSpec((1, 1, N, N), lambda b, hd: (b, hd, 0, 0)),
        ],
        out_shape=[
            jax.ShapeDtypeStruct((B, C, N), x.dtype),
            jax.ShapeDtypeStruct((B, h, N, N), attn_dtype),
        ],
        compiler_params=pltpu.CompilerParams(
            dimension_semantics=("parallel", "parallel")),        # B x head -> megacore balance
        cost_estimate=cost,
    )(x_flat, w_heads, b_heads, gamma)

    return out.reshape(B, C, W, H), attn


def reference(x, wq, bq, wk, bk, wv, bv, gamma, num_heads, k):
    """Plain-JAX replica of the PyTorch forward for verification."""
    B, C, W, H = x.shape
    N = W * H
    h = num_heads
    d_qk = C // k // h
    d_v = C // h
    xf = x.reshape(B, C, N)
    q = jnp.einsum('oc,bcn->bon', wq, xf) + bq[None, :, None]
    kp = jnp.einsum('oc,bcn->bon', wk, xf) + bk[None, :, None]
    v = jnp.einsum('oc,bcn->bon', wv, xf) + bv[None, :, None]
    queries = q.reshape(B, h, d_qk, N).transpose(0, 1, 3, 2)    # (B,h,N,d_qk)
    keys = kp.reshape(B, h, d_qk, N)                            # (B,h,d_qk,N)
    values = v.reshape(B, h, d_v, N)                            # (B,h,d_v,N)
    qk_s = jnp.einsum('bhnd,bhdm->bhnm', queries, keys)         # (B,h,N,N)
    attn = jax.nn.softmax(qk_s, axis=-1)
    out = jnp.einsum('bhdn,bhmn->bhdm', values, attn)           # (B,h,d_v,N)
    out = out.reshape(B, C, W, H)
    out = gamma[0] * out + x
    return out, attn


if __name__ == "__main__":
    B, C, W, H = 2, 32, 16, 16        # N = 256 -> lane-dense (128-multiple) stores
    num_heads, kk = 4, 2
    assert C // kk % num_heads == 0 and C % num_heads == 0

    key = jax.random.PRNGKey(0)
    keys = jax.random.split(key, 7)
    # Deterministic synthetic parameters (Conv2d 1x1 weights flattened to 2D).
    wq = jax.random.normal(keys[0], (C // kk, C), jnp.float32) * 0.1
    bq = jax.random.normal(keys[1], (C // kk,), jnp.float32) * 0.1
    wk = jax.random.normal(keys[2], (C // kk, C), jnp.float32) * 0.1
    bk = jax.random.normal(keys[3], (C // kk,), jnp.float32) * 0.1
    wv = jax.random.normal(keys[4], (C, C), jnp.float32) * 0.1
    bv = jax.random.normal(keys[5], (C,), jnp.float32) * 0.1
    # Module inits gamma = 0.0; use a nonzero value to exercise the residual path.
    gamma = jnp.array([0.25], jnp.float32)

    x = jax.random.normal(keys[6], (B, C, W, H), jnp.float32)

    out_ref, attn_ref = reference(x, wq, bq, wk, bk, wv, bv, gamma, num_heads, kk)

    # 1) Strict path: f32 MXU operands, f32 attention output (only the EUP
    #    approximate-reciprocal in the softmax denominator deviates, ~1e-4 rel).
    out_s, attn_s = mhsa_forward(x, wq, bq, wk, bk, wv, bv, gamma,
                                 num_heads=num_heads, k=kk,
                                 use_bf16_mxu=False, attn_dtype=jnp.float32)
    jax.block_until_ready((out_s, attn_s))
    np.testing.assert_allclose(np.asarray(out_s), np.asarray(out_ref),
                               rtol=2e-3, atol=2e-4)
    np.testing.assert_allclose(np.asarray(attn_s), np.asarray(attn_ref),
                               rtol=2e-3, atol=2e-4)

    # 2) Fast default path (v6e/v7x): bf16 MXU operands (f32 accumulation) and
    #    bf16 attention-map output -> halves the dominant HBM writeback.
    out_f, attn_f = mhsa_forward(x, wq, bq, wk, bk, wv, bv, gamma,
                                 num_heads=num_heads, k=kk)
    jax.block_until_ready((out_f, attn_f))
    np.testing.assert_allclose(np.asarray(out_f), np.asarray(out_ref),
                               rtol=2e-2, atol=1e-2)
    np.testing.assert_allclose(np.asarray(attn_f, dtype=np.float32),
                               np.asarray(attn_ref), rtol=5e-2, atol=1e-2)

    print("KERNEL_OK")
</pallas_src>

<mosaic_0001>
module attributes {stable_mosaic.version = 11 : i64} {
  func.func @mhsa_kernel(%arg0: i32, %arg1: i32, %arg2: memref<1x32x256xf32, #tpu.memory_space<vmem>>, %arg3: memref<1x24x32xf32, #tpu.memory_space<vmem>>, %arg4: memref<1x24x1xf32, #tpu.memory_space<vmem>>, %arg5: memref<1xf32, #tpu.memory_space<smem>>, %arg6: memref<1x8x256xf32, #tpu.memory_space<vmem>>, %arg7: memref<1x1x256x256xf32, #tpu.memory_space<vmem>>) attributes {dimension_semantics = [#tpu.dimension_semantics<parallel>, #tpu.dimension_semantics<parallel>], iteration_bounds = array<i64: 2, 4>, scalar_prefetch = 0 : i64, scratch_operands = 0 : i64, tpu.core_type = #tpu.core_type<tc>, window_params = [{transform_indices = @transform_0, window_bounds = array<i64: 1, 32, 256>}, {transform_indices = @transform_1, window_bounds = array<i64: 1, 24, 32>}, {transform_indices = @transform_2, window_bounds = array<i64: 1, 24, 1>}, {transform_indices = @transform_3, window_bounds = array<i64: 1>}, {transform_indices = @transform_4, window_bounds = array<i64: 1, 8, 256>}, {transform_indices = @transform_5, window_bounds = array<i64: 1, 1, 256, 256>}]} {
    %c0 = arith.constant 0 : index
    %c0_0 = arith.constant 0 : index
    %c0_1 = arith.constant 0 : index
    %0 = vector.load %arg2[%c0, %c0_0, %c0_1] : memref<1x32x256xf32, #tpu.memory_space<vmem>>, vector<1x32x256xf32>
    %1 = vector.shape_cast %0 : vector<1x32x256xf32> to vector<32x256xf32>
    %c0_2 = arith.constant 0 : index
    %c0_3 = arith.constant 0 : index
    %c0_4 = arith.constant 0 : index
    %2 = vector.load %arg3[%c0_2, %c0_3, %c0_4] : memref<1x24x32xf32, #tpu.memory_space<vmem>>, vector<1x24x32xf32>
    %3 = vector.shape_cast %2 : vector<1x24x32xf32> to vector<24x32xf32>
    %cst = arith.constant dense<0.000000e+00> : vector<24x256xf32>
    %4 = tpu.matmul %3, %1, %cst {dimension_numbers = #tpu.dot_dimension_numbers<[1], [0], [0], [1], [0, 0, 1, 1], [], []>} : vector<24x32xf32>, vector<32x256xf32>, vector<24x256xf32> -> vector<24x256xf32>
    %c0_5 = arith.constant 0 : index
    %c0_6 = arith.constant 0 : index
    %c0_7 = arith.constant 0 : index
    %5 = vector.load %arg4[%c0_5, %c0_6, %c0_7] : memref<1x24x1xf32, #tpu.memory_space<vmem>>, vector<1x24x1xf32>
    %6 = vector.shape_cast %5 : vector<1x24x1xf32> to vector<24x1xf32>
    %7 = vector.broadcast %6 : vector<24x1xf32> to vector<24x256xf32>
    %8 = arith.addf %4, %7 : vector<24x256xf32>
    %9 = vector.extract_strided_slice %8 {offsets = [0, 0], sizes = [8, 256], strides = [1, 1]} : vector<24x256xf32> to vector<8x256xf32>
    %10 = vector.extract_strided_slice %8 {offsets = [8, 0], sizes = [8, 256], strides = [1, 1]} : vector<24x256xf32> to vector<8x256xf32>
    %11 = vector.extract_strided_slice %8 {offsets = [16, 0], sizes = [8, 256], strides = [1, 1]} : vector<24x256xf32> to vector<8x256xf32>
    %cst_8 = arith.constant dense<0.000000e+00> : vector<256x256xf32>
    %12 = tpu.matmul %9, %10, %cst_8 {dimension_numbers = #tpu.dot_dimension_numbers<[0], [0], [1], [1], [0, 1, 1, 1], [], []>} : vector<8x256xf32>, vector<8x256xf32>, vector<256x256xf32> -> vector<256x256xf32>
    %cst_9 = arith.constant dense<0xFF800000> : vector<256xf32>
    %13 = vector.multi_reduction <maximumf>, %12, %cst_9 [1] : vector<256x256xf32> to vector<256xf32>
    %14 = vector.shape_cast %13 : vector<256xf32> to vector<256x1xf32>
    %15 = vector.broadcast %14 : vector<256x1xf32> to vector<256x256xf32>
    %16 = arith.subf %12, %15 : vector<256x256xf32>
    %17 = math.exp %16 : vector<256x256xf32>
    %cst_10 = arith.constant dense<0.000000e+00> : vector<256xf32>
    %18 = vector.multi_reduction <add>, %17, %cst_10 [1] : vector<256x256xf32> to vector<256xf32>
    %19 = vector.shape_cast %18 : vector<256xf32> to vector<256x1xf32>
    %20 = tpu.reciprocal %19 {approx = true} : vector<256x1xf32> -> vector<256x1xf32>
    %21 = vector.broadcast %20 : vector<256x1xf32> to vector<256x256xf32>
    %22 = arith.mulf %17, %21 : vector<256x256xf32>
    %c0_11 = arith.constant 0 : index
    %c0_12 = arith.constant 0 : index
    %c0_13 = arith.constant 0 : index
    %c0_14 = arith.constant 0 : index
    %23 = vector.load %arg7[%c0_11, %c0_12, %c0_13, %c0_14] : memref<1x1x256x256xf32, #tpu.memory_space<vmem>>, vector<1x1x256x256xf32>
    %24 = vector.shape_cast %23 : vector<1x1x256x256xf32> to vector<256x256xf32>
    %25 = vector.shape_cast %22 : vector<256x256xf32> to vector<1x1x256x256xf32>
    tpu.vector_store %arg7[%c0_11, %c0_12, %c0_13, %c0_14], %25 {strides = array<i32>} : memref<1x1x256x256xf32, #tpu.memory_space<vmem>>, vector<1x1x256x256xf32>,
    %cst_15 = arith.constant dense<0.000000e+00> : vector<8x256xf32>
    %26 = tpu.matmul %11, %22, %cst_15 {dimension_numbers = #tpu.dot_dimension_numbers<[1], [1], [0], [0], [0, 0, 1, 0], [], []>} : vector<8x256xf32>, vector<256x256xf32>, vector<8x256xf32> -> vector<8x256xf32>
    %c8_i32 = arith.constant 8 : i32
    %27 = arith.muli %arg1, %c8_i32 : i32
    %28 = tpu.assume_multiple %27, 8 : i32
    %c0_16 = arith.constant 0 : index
    %29 = arith.index_cast %28 : i32 to index
    %c0_17 = arith.constant 0 : index
    %30 = vector.load %arg2[%c0_16, %29, %c0_17] : memref<1x32x256xf32, #tpu.memory_space<vmem>>, vector<1x8x256xf32>
    %31 = vector.shape_cast %30 : vector<1x8x256xf32> to vector<8x256xf32>
    %c0_18 = arith.constant 0 : index
    %32 = memref.load %arg5[%c0_18] : memref<1xf32, #tpu.memory_space<smem>>
    %33 = vector.broadcast %32 : f32 to vector<8x256xf32>
    %34 = arith.mulf %33, %26 : vector<8x256xf32>
    %35 = arith.addf %34, %31 : vector<8x256xf32>
    %c0_19 = arith.constant 0 : index
    %c0_20 = arith.constant 0 : index
    %c0_21 = arith.constant 0 : index
    %36 = vector.load %arg6[%c0_19, %c0_20, %c0_21] : memref<1x8x256xf32, #tpu.memory_space<vmem>>, vector<1x8x256xf32>
    %37 = vector.shape_cast %36 : vector<1x8x256xf32> to vector<8x256xf32>
    %38 = vector.shape_cast %35 : vector<8x256xf32> to vector<1x8x256xf32>
    tpu.vector_store %arg6[%c0_19, %c0_20, %c0_21], %38 {strides = array<i32>} : memref<1x8x256xf32, #tpu.memory_space<vmem>>, vector<1x8x256xf32>,
    return
  }
  func.func @transform_0(%arg0: i32, %arg1: i32) -> (i32, i32, i32) {
    %c0_i32 = arith.constant 0 : i32
    %c0_i32_0 = arith.constant 0 : i32
    %c0_i32_1 = arith.constant 0 : i32
    return %arg0, %c0_i32, %c0_i32_0 : i32, i32, i32
  }
  func.func @transform_1(%arg0: i32, %arg1: i32) -> (i32, i32, i32) {
    %c0_i32 = arith.constant 0 : i32
    %c0_i32_0 = arith.constant 0 : i32
    %c0_i32_1 = arith.constant 0 : i32
    return %arg1, %c0_i32, %c0_i32_0 : i32, i32, i32
  }
  func.func @transform_2(%arg0: i32, %arg1: i32) -> (i32, i32, i32) {
    %c0_i32 = arith.constant 0 : i32
    %c0_i32_0 = arith.constant 0 : i32
    %c0_i32_1 = arith.constant 0 : i32
    return %arg1, %c0_i32, %c0_i32_0 : i32, i32, i32
  }
  func.func @transform_3(%arg0: i32, %arg1: i32) -> i32 {
    %c0_i32 = arith.constant 0 : i32
    %c0_i32_0 = arith.constant 0 : i32
    return %c0_i32 : i32
  }
  func.func @transform_4(%arg0: i32, %arg1: i32) -> (i32, i32, i32) {
    %c0_i32 = arith.constant 0 : i32
    %c0_i32_0 = arith.constant 0 : i32
    return %arg0, %arg1, %c0_i32 : i32, i32, i32
  }
  func.func @transform_5(%arg0: i32, %arg1: i32) -> (i32, i32, i32, i32) {
    %c0_i32 = arith.constant 0 : i32
    %c0_i32_0 = arith.constant 0 : i32
    %c0_i32_1 = arith.constant 0 : i32
    return %arg0, %arg1, %c0_i32, %c0_i32_0 : i32, i32, i32, i32
  }
}

</mosaic_0001>

<llo_original>
// kernel: mhsa_forward.1
$region0: #{mhsa_forward.1}
  #allocation0 [shape = 'u32[]', space=smem, size = 0x4, offset = 0x4, fixed_abs, tag = 'smem constant byte address 0x4 - core index']
  #allocation1 [shape = 'u32[144,128]{1,0:T(1,128)}', space=vmem, size = 0x12000, scoped, tag = 'internal scratch']
  #allocation2 [shape = 'f32[1]{0:T(128)S(6)}', space=smem, size = 0x200, scoped, tag = 'scoped memory for mhsa_forward.1']
  %s0 = inlined_call_operand.vmem [shape: f32[2,32,256], index: 0, kind: input, shape index: {}]
  %s1 = inlined_call_operand.vmem [shape: f32[4,24,32], index: 1, kind: input, shape index: {}]
  %s2 = inlined_call_operand.vmem [shape: f32[4,24,1], index: 2, kind: input, shape index: {}]
  %s3 = inlined_call_operand.<no memory space> [shape: f32[1], index: 3, kind: input, shape index: {}]
  %s4 = inlined_call_operand.vmem [shape: f32[2,32,256], index: 4, kind: output, shape index: {0}]
  %s5 = inlined_call_operand.hbm [shape: f32[2,4,256,256], index: 5, kind: output, shape index: {1}]
  %6 = xla_tuple %s4, %s5
  %s7 = sld [smem:[#allocation0]]
  $region57: #{mhsa_forward.1} parent=0
    _
  %s9 = ssub.s32 1, %s7
  %s10 = scalar_select 0, %s9, %s7
  %11 = sst [smem:[#allocation2]] %s3
  $region1: #{mhsa_forward.1} parent=0
    #allocation3 [shape = 'u8[524288]{0}', space=vmem, size = 0x80000, scoped, tag = 'output window, operand 1']
    #allocation4 [shape = 's32[2]{0}', space=sflag, size = 0x8, scoped, tag = 'scoped memory for mhsa_forward.1']
    %12 = vsyncpa [#allocation4], 0
    %s13 = scalar_lea.sflag [#allocation4], 1
    %14 = vsyncpa %s13, 0
    loop: start=0, step=1, limit=10
    $region2: #{mhsa_forward.1} parent=1 // loop_pre_header
      _
    $region3: #{mhsa_forward.1} parent=1 // loop_header
      %s16 = sphi 0, %s20
      %p17 = scmp.ge.s32.totalorder %s16, 10
      %s23 = sphi 0, %s35
      %s24 = sphi 0, %s31
      %s25 = sphi 0, %s23
      %s26 = sphi 0, %s24
      %s27 = sphi 0, %s25
      %s28 = sphi 0, %s26
      %s38 = sphi 0, %s40
      %s41 = sphi 0, %s38
      %s42 = sphi 0, %s41
      %s58 = sphi 0, %s42
      %s64 = sphi 0, %s66
      %s67 = sphi 0, %s64
      %s68 = sphi 0, %s67
      %s84 = sphi 0, %s68
      %s90 = sphi 0, %s92
      %s93 = sphi 0, %s90
      %s94 = sphi 0, %s93
      %s110 = sphi 0, %s94
      %s114 = sphi 0, %s114
      %s116 = sphi 0, %s114
      %s117 = sphi 0, %s116
      %s131 = sphi 0, %s117
      %s139 = sphi 0, %s141
      %s142 = sphi 0, %s139
      %s143 = sphi 0, %s142
      %s159 = sphi 0, %s143
      %s167 = sphi 0, %s169
      %s170 = sphi 0, %s167
      %s171 = sphi 0, %s170
      %s187 = sphi 0, %s171
    $region4: #{mhsa_forward.1} parent=1 // loop_header_branch
      %19 = sbr.rel (%p17) target = $region8
    $region5: #{mhsa_forward.1} parent=1 // loop_body
      %s21 = ssub.s32 %s16, 1
      %s22 = ssub.s32 %s16, 2
      %s29 = sadd.s32 1, %s24
      %p30 = scmp.ge.s32.totalorder %s29, 4
      %s31 = scalar_select %p30, 0, %s29
      %s32 = sadd.s32 1, %s23
      %s33 = scalar_select %p30, %s32, %s23
      %p34 = scmp.ge.s32.totalorder %s33, 2
      %s35 = scalar_select %p34, 0, %s33
      %s36 = ssub.s32 %s23, %s35
      %p37 = scmp.eq.s32.totalorder %s36, 0
      %s39 = sadd.s32 %s38, 1
      %s40 = scalar_select %p37, %s38, %s39
      %p43 = pneg %p37
      %p44 = scmp.eq.s32.totalorder %s16, 7
      %p45 = por %p43, %p44
      %p46 = scmp.ne.s32.totalorder %s38, %s41
      %p47 = scmp.eq.s32.totalorder %s16, 0
      %p48 = por %p46, %p47
      %p49 = scmp.ne.s32.totalorder %s38, %s41
      %p50 = scmp.eq.s32.totalorder %s21, 7
      %p51 = por %p49, %p50
      %p52 = scmp.ne.s32.totalorder %s41, %s42
      %p53 = scmp.eq.s32.totalorder %s21, 0
      %p54 = por %p52, %p53
      %p55 = scmp.ne.s32.totalorder %s41, %s42
      %p56 = scmp.eq.s32.totalorder %s22, 7
      %p57 = por %p55, %p56
      %p59 = scmp.ne.s32.totalorder %s42, %s58
      %p60 = scmp.eq.s32.totalorder %s22, 0
      %p61 = por %p59, %p60
      %s62 = ssub.s32 %s24, %s31
      %p63 = scmp.eq.s32.totalorder %s62, 0
      %s65 = sadd.s32 %s64, 1
      %s66 = scalar_select %p63, %s64, %s65
      %p69 = pneg %p63
      %p70 = scmp.eq.s32.totalorder %s16, 7
      %p71 = por %p69, %p70
      %p72 = scmp.ne.s32.totalorder %s64, %s67
      %p73 = scmp.eq.s32.totalorder %s16, 0
      %p74 = por %p72, %p73
      %p75 = scmp.ne.s32.totalorder %s64, %s67
      %p76 = scmp.eq.s32.totalorder %s21, 7
      %p77 = por %p75, %p76
      %p78 = scmp.ne.s32.totalorder %s67, %s68
      %p79 = scmp.eq.s32.totalorder %s21, 0
      %p80 = por %p78, %p79
      %p81 = scmp.ne.s32.totalorder %s67, %s68
      %p82 = scmp.eq.s32.totalorder %s22, 7
      %p83 = por %p81, %p82
      %p85 = scmp.ne.s32.totalorder %s68, %s84
      %p86 = scmp.eq.s32.totalorder %s22, 0
      %p87 = por %p85, %p86
      %s88 = ssub.s32 %s24, %s31
      %p89 = scmp.eq.s32.totalorder %s88, 0
      %s91 = sadd.s32 %s90, 1
      %s92 = scalar_select %p89, %s90, %s91
      %p95 = pneg %p89
      %p96 = scmp.eq.s32.totalorder %s16, 7
      %p97 = por %p95, %p96
      %p98 = scmp.ne.s32.totalorder %s90, %s93
      %p99 = scmp.eq.s32.totalorder %s16, 0
      %p100 = por %p98, %p99
      %p101 = scmp.ne.s32.totalorder %s90, %s93
      %p102 = scmp.eq.s32.totalorder %s21, 7
      %p103 = por %p101, %p102
      %p104 = scmp.ne.s32.totalorder %s93, %s94
      %p105 = scmp.eq.s32.totalorder %s21, 0
      %p106 = por %p104, %p105
      %p107 = scmp.ne.s32.totalorder %s93, %s94
      %p108 = scmp.eq.s32.totalorder %s22, 7
      %p109 = por %p107, %p108
      %p111 = scmp.ne.s32.totalorder %s94, %s110
      %p112 = scmp.eq.s32.totalorder %s22, 0
      %p113 = por %p111, %p112
      %s115 = sadd.s32 %s114, 1
      %p118 = scmp.eq.s32.totalorder %s16, 7
      %p119 = scmp.ne.s32.totalorder %s114, %s116
      %p120 = scmp.eq.s32.totalorder %s16, 0
      %p121 = por %p119, %p120
      %p122 = scmp.ne.s32.totalorder %s114, %s116
      %p123 = scmp.eq.s32.totalorder %s21, 7
      %p124 = por %p122, %p123
      %p125 = scmp.ne.s32.totalorder %s116, %s117
      %p126 = scmp.eq.s32.totalorder %s21, 0
      %p127 = por %p125, %p126
      %p128 = scmp.ne.s32.totalorder %s116, %s117
      %p129 = scmp.eq.s32.totalorder %s22, 7
      %p130 = por %p128, %p129
      %p132 = scmp.ne.s32.totalorder %s117, %s131
      %p133 = scmp.eq.s32.totalorder %s22, 0
      %p134 = por %p132, %p133
      %s135 = ssub.s32 %s23, %s35
      %s136 = ssub.s32 %s24, %s31
      %s137 = sor.u32 %s135, %s136
      %p138 = scmp.eq.s32.totalorder %s137, 0
      %s140 = sadd.s32 %s139, 1
      %s141 = scalar_select %p138, %s139, %s140
      %p144 = pneg %p138
      %p145 = scmp.eq.s32.totalorder %s16, 7
      %p146 = por %p144, %p145
      %p147 = scmp.ne.s32.totalorder %s139, %s142
      %p148 = scmp.eq.s32.totalorder %s16, 0
      %p149 = por %p147, %p148
      %p150 = scmp.ne.s32.totalorder %s139, %s142
      %p151 = scmp.eq.s32.totalorder %s21, 7
      %p152 = por %p150, %p151
      %p153 = scmp.ne.s32.totalorder %s142, %s143
      %p154 = scmp.eq.s32.totalorder %s21, 0
      %p155 = por %p153, %p154
      %p156 = scmp.ne.s32.totalorder %s142, %s143
      %p157 = scmp.eq.s32.totalorder %s22, 7
      %p158 = por %p156, %p157
      %p160 = scmp.ne.s32.totalorder %s143, %s159
      %p161 = scmp.eq.s32.totalorder %s22, 0
      %p162 = por %p160, %p161
      %s163 = ssub.s32 %s23, %s35
      %s164 = ssub.s32 %s24, %s31
      %s165 = sor.u32 %s163, %s164
      %p166 = scmp.eq.s32.totalorder %s165, 0
      %s168 = sadd.s32 %s167, 1
      %s169 = scalar_select %p166, %s167, %s168
      %p172 = pneg %p166
      %p173 = scmp.eq.s32.totalorder %s16, 7
      %p174 = por %p172, %p173
      %p175 = scmp.ne.s32.totalorder %s167, %s170
      %p176 = scmp.eq.s32.totalorder %s16, 0
      %p177 = por %p175, %p176
      %p178 = scmp.ne.s32.totalorder %s167, %s170
      %p179 = scmp.eq.s32.totalorder %s21, 7
      %p180 = por %p178, %p179
      %p181 = scmp.ne.s32.totalorder %s170, %s171
      %p182 = scmp.eq.s32.totalorder %s21, 0
      %p183 = por %p181, %p182
      %p184 = scmp.ne.s32.totalorder %s170, %s171
      %p185 = scmp.eq.s32.totalorder %s22, 7
      %p186 = por %p184, %p185
      %p188 = scmp.ne.s32.totalorder %s171, %s187
      %p189 = scmp.eq.s32.totalorder %s22, 0
      %p190 = por %p188, %p189
      %p191 = scmp.le.s32.totalorder 1, %s16
      %p192 = scmp.lt.s32.totalorder %s16, 9
      %p193 = pnand %p191, %p192
      %p194 = pneg %p193
      // Predicated region
      $region9: #{mhsa_forward.1} parent=5 // pred_check
        _
      $region10: #{mhsa_forward.1} parent=5 // pred_check_branch
        %196 = sbr.rel (%p193) target = $region12
      $region11: #{mhsa_forward.1} parent=5 // pred_region
        %s197 = ssub.s32 %s16, 1
        // Predicated region
        $region13: #{mhsa_forward.1} parent=11 // pred_check
          %p198 = pneg %p127
        $region14: #{mhsa_forward.1} parent=11 // pred_check_branch
          %200 = sbr.rel (%p198) target = $region16
        $region15: #{mhsa_forward.1} parent=11 // pred_region
          _
        $region16: #{mhsa_forward.1} parent=11 // pred_fallthru
          _
      $region12: #{mhsa_forward.1} parent=5 // pred_fallthru
        _
      %p201 = scmp.lt.s32.totalorder %s16, 8
      // Predicated region
      $region17: #{mhsa_forward.1} parent=5 // pred_check
        %p202 = pneg %p201
      $region18: #{mhsa_forward.1} parent=5 // pred_check_branch
        %204 = sbr.rel (%p202) target = $region20
      $region19: #{mhsa_forward.1} parent=5 // pred_region
        // Predicated region
        $region21: #{mhsa_forward.1} parent=19 // pred_check
          %p205 = pneg %p48
        $region22: #{mhsa_forward.1} parent=19 // pred_check_branch
          %207 = sbr.rel (%p205) target = $region24
        $region23: #{mhsa_forward.1} parent=19 // pred_region
          %p208 = scmp.lt.s32.totalorder %s23, 1
          %s209 = scalar_select %p208, %s23, 1
          %s210 = smul.addr %s209, 8
          %s211 = smul.addr %s210, 8
          %s212 = scalar_lea.vmem %s0, %s211
        $region24: #{mhsa_forward.1} parent=19 // pred_fallthru
          _
        // Predicated region
        $region25: #{mhsa_forward.1} parent=19 // pred_check
          %p213 = pneg %p74
        $region26: #{mhsa_forward.1} parent=19 // pred_check_branch
          %215 = sbr.rel (%p213) target = $region28
        $region27: #{mhsa_forward.1} parent=19 // pred_region
          %p216 = scmp.lt.s32.totalorder %s24, 3
          %s217 = scalar_select %p216, %s24, 3
          %s218 = smul.addr %s217, 3
          %s219 = smul.addr %s218, 8
          %s220 = scalar_lea.vmem %s1, %s219
        $region28: #{mhsa_forward.1} parent=19 // pred_fallthru
          _
        // Predicated region
        $region29: #{mhsa_forward.1} parent=19 // pred_check
          %p221 = pneg %p100
        $region30: #{mhsa_forward.1} parent=19 // pred_check_branch
          %223 = sbr.rel (%p221) target = $region32
        $region31: #{mhsa_forward.1} parent=19 // pred_region
          %p224 = scmp.lt.s32.totalorder %s24, 3
          %s225 = scalar_select %p224, %s24, 3
          %s226 = smul.addr %s225, 3
          %s227 = smul.addr %s226, 8
          %s228 = scalar_lea.vmem %s2, %s227
        $region32: #{mhsa_forward.1} parent=19 // pred_fallthru
          _
      $region20: #{mhsa_forward.1} parent=5 // pred_fallthru
        _
      %p229 = scmp.le.s32.totalorder 1, %s16
      %p230 = scmp.lt.s32.totalorder %s16, 9
      %p231 = pnand %p229, %p230
      %p232 = pneg %p231
      // Predicated region
      $region33: #{mhsa_forward.1} parent=5 // pred_check
        _
      $region34: #{mhsa_forward.1} parent=5 // pred_check_branch
        %234 = sbr.rel (%p231) target = $region36
      $region35: #{mhsa_forward.1} parent=5 // pred_region
        %s235 = ssub.s32 %s16, 1
        %p236 = scmp.lt.s32.totalorder %s25, 1
        %s237 = scalar_select %p236, %s25, 1
        %s238 = smul.addr %s237, 8
        %s239 = smul.addr %s238, 8
        %s240 = scalar_lea.vmem %s0, %s239
        %p241 = pneg %p54
        %p242 = pneg %p51
        %p243 = scmp.lt.s32.totalorder %s26, 3
        %s244 = scalar_select %p243, %s26, 3
        %s245 = smul.addr %s244, 3
        %s246 = smul.addr %s245, 8
        %s247 = scalar_lea.vmem %s1, %s246
        %p248 = pneg %p80
        %p249 = pneg %p77
        %p250 = scmp.lt.s32.totalorder %s26, 3
        %s251 = scalar_select %p250, %s26, 3
        %s252 = smul.addr %s251, 3
        %s253 = smul.addr %s252, 8
        %s254 = scalar_lea.vmem %s2, %s253
        %p255 = pneg %p106
        %p256 = pneg %p103
        %p257 = pneg %p127
        %p258 = pneg %p124
        %p259 = pneg %p155
        %p260 = pneg %p152
        %p261 = scmp.lt.s32.totalorder %s25, 1
        %s262 = scalar_select %p261, %s25, 1
        %p263 = scmp.lt.s32.totalorder %s26, 3
        %s264 = scalar_select %p263, %s26, 3
        %s265 = smul.addr %s264, 2
        %s266 = smul.addr %s262, 8
        %s267 = sadd.s32 %s265, %s266
        %s268 = smul.addr %s267, 8
        %s269 = scalar_lea.vmem %s4, %s268
        %p270 = pneg %p183
        %p271 = pneg %p180
        %s272 = sand.u32 %s170, 1
        %s273 = scalar_lea.sflag [#allocation4], %s272
        %s274 = sand.u32 %s170, 1
        %s275 = smul.addr %s274, 512
        %s276 = scalar_lea.vmem [#allocation3], %s275
        %p277 = scmp.lt.s32.totalorder %s25, 1
        %s278 = scalar_select %p277, %s25, 1
        %s279 = smul.addr %s278, 8
        %s280 = smul.addr %s279, 8
        %s281 = scalar_lea.vmem %s0, %s280
        %p282 = scmp.lt.s32.totalorder %s26, 3
        %s283 = scalar_select %p282, %s26, 3
        %s284 = smul.addr %s283, 3
        %s285 = smul.addr %s284, 8
        %s286 = scalar_lea.vmem %s1, %s285
        %p287 = scmp.lt.s32.totalorder %s26, 3
        %s288 = scalar_select %p287, %s26, 3
        %s289 = smul.addr %s288, 3
        %s290 = smul.addr %s289, 8
        %s291 = scalar_lea.vmem %s2, %s290
        %p292 = scmp.lt.s32.totalorder %s25, 1
        %s293 = scalar_select %p292, %s25, 1
        %p294 = scmp.lt.s32.totalorder %s26, 3
        %s295 = scalar_select %p294, %s26, 3
        %s296 = smul.addr %s295, 2
        %s297 = smul.addr %s293, 8
        %s298 = sadd.s32 %s296, %s297
        %s299 = smul.addr %s298, 8
        %s300 = scalar_lea.vmem %s4, %s299
        %v301 = vld [vmem:[%s281] sm:$0xff]
        %v302 = vld [vmem:[%s281 + $0x8] sm:$0xff]
        %v303 = vld [vmem:[%s281 + $0x10] sm:$0xff]
        %v304 = vld [vmem:[%s281 + $0x18] sm:$0xff]
        %v305 = vld [vmem:[%s281 + $0x20] sm:$0xff]
        %v306 = vld [vmem:[%s281 + $0x28] sm:$0xff]
        %v307 = vld [vmem:[%s281 + $0x30] sm:$0xff]
        %v308 = vld [vmem:[%s281 + $0x38] sm:$0xff]
        %v309 = vld [vmem:[%s286] sm:$0xff]
        %v310 = vld [vmem:[%s286 + $0x8] sm:$0xff]
        %v311 = vld [vmem:[%s286 + $0x10] sm:$0xff]
        %v312 = vld [vmem:[%s291] sm:$0xff]
        %v313 = vld [vmem:[%s291 + $0x8] sm:$0xff]
        %v314 = vld [vmem:[%s291 + $0x10] sm:$0xff]
        %316 = vset.pattern.permute.xlu0 0
        %317 = vperm.xlu0 %316, %v312
        %v318 = vpop.permute.xlu0 %317
        %321 = vset.pattern.permute.xlu0 0
        %322 = vperm.xlu0 %321, %v313
        %v323 = vpop.permute.xlu0 %322
        %326 = vset.pattern.permute.xlu0 0
        %327 = vperm.xlu0 %326, %v314
        %v328 = vpop.permute.xlu0 %327
        %vm330 = vcmask 261120
        %v332 = vsel %vm330, %v309, 0
        %v335 = vsel %vm330, %v310, 0
        %v338 = vsel %vm330, %v311, 0
        %340 = vmatprep.subr.mxu0 0.0
        %341 = vmatpush1.msra.mxu0 0.0
        %342 = vmatprep.subr.mxu0 0.0
        %343 = vmatpush1.msra.mxu0 0.0
        %344 = vmatprep.subr.mxu0 0.0
        %345 = vmatpush1.msra.mxu0 0.0
        %346 = vmatprep.subr.mxu0 0.0
        %347 = vmatpush1.msra.mxu0 0.0
        %348 = vmatprep.subr.mxu0 0.0
        %349 = vmatpush1.msra.mxu0 0.0
        %350 = vmatprep.subr.mxu0 0.0
        %351 = vmatpush1.msra.mxu0 0.0
        %352 = vmatprep.subr.mxu0 0.0
        %353 = vmatpush1.msra.mxu0 0.0
        %354 = vmatprep.subr.mxu0 0.0
        %355 = vmatpush1.msra.mxu0 0.0
        %356 = vmatprep.subr.mxu0 0.0
        %357 = vmatpush1.msra.mxu0 0.0
        %358 = vmatprep.subr.mxu0 0.0
        %359 = vmatpush1.msra.mxu0 0.0
        %360 = vmatprep.subr.mxu0 0.0
        %361 = vmatpush1.msra.mxu0 0.0
        %362 = vmatprep.subr.mxu0 0.0
        %363 = vmatpush1.msra.mxu0 0.0
        %364 = vmatprep.subr.mxu0 %v308
        %365 = vmatpush1.msra.mxu0 %v307
        %366 = vmatprep.subr.mxu0 %v306
        %367 = vmatpush1.msra.mxu0 %v305
        %368 = vmatprep.subr.mxu0 %v304
        %369 = vmatpush1.msra.mxu0 %v303
        %370 = vmatprep.subr.mxu0 %v302
        %371 = vmatpush1.msra.mxu0 %v301
        %372 = vmatprep.subr.mxu0 0.0
        %373 = vmatpush2.msra.mxu0 0.0
        %374 = vmatprep.subr.mxu0 0.0
        %375 = vmatpush2.msra.mxu0 0.0
        %376 = vmatprep.subr.mxu0 0.0
        %377 = vmatpush2.msra.mxu0 0.0
        %378 = vmatprep.subr.mxu0 0.0
        %379 = vmatpush2.msra.mxu0 0.0
        %380 = vmatprep.subr.mxu0 0.0
        %381 = vmatpush2.msra.mxu0 0.0
        %382 = vmatprep.subr.mxu0 0.0
        %383 = vmatpush2.msra.mxu0 0.0
        %384 = vmatprep.subr.mxu0 0.0
        %385 = vmatpush2.msra.mxu0 0.0
        %386 = vmatprep.subr.mxu0 0.0
        %387 = vmatpush2.msra.mxu0 0.0
        %388 = vmatprep.subr.mxu0 0.0
        %389 = vmatpush2.msra.mxu0 0.0
        %390 = vmatprep.subr.mxu0 0.0
        %391 = vmatpush2.msra.mxu0 0.0
        %392 = vmatprep.subr.mxu0 0.0
        %393 = vmatpush2.msra.mxu0 0.0
        %394 = vmatprep.subr.mxu0 0.0
        %395 = vmatpush2.msra.mxu0 0.0
        %396 = vmatprep.subr.mxu0 0.0
        %397 = vmatpush2.msra.mxu0 0.0
        %398 = vmatprep.subr.mxu0 0.0
        %399 = vmatpush2.msra.mxu0 0.0
        %400 = vmatprep.subr.mxu0 0.0
        %401 = vmatpush2.msra.mxu0 0.0
        %402 = vmatprep.subr.mxu0 0.0
        %403 = vmatpush2.msra.mxu0 0.0
        %404 = vmatprep.mubr.f32.mxu0 0.0
        %405 = vmatmul.mubr.f32.gmra.mxu0 %v332
        %v406 = vpop.f32.mrf.mxu0
        %v407 = vadd.f32 %v318, %v406
        %v408 = vpop.f32.mrf.mxu0
        %v409 = vadd.f32 %v318, %v408
        %410 = vmatprep.mubr.f32.mxu0 0.0
        %411 = vmatmul.mubr.f32.gmra.mxu0 %v335
        %v412 = vpop.f32.mrf.mxu0
        %v413 = vadd.f32 %v323, %v412
        %v414 = vpop.f32.mrf.mxu0
        %v415 = vadd.f32 %v323, %v414
        %416 = vmatprep.mubr.f32.mxu0 0.0
        %417 = vmatmul.mubr.f32.gmra.mxu0 %v338
        %v418 = vpop.f32.mrf.mxu0
        %v419 = vadd.f32 %v328, %v418
        %v420 = vpop.f32.mrf.mxu0
        %v421 = vadd.f32 %v328, %v420
        %422 = vdwg.mxu0
        %423 = vxpose.xlu0.b32.start [1/16] %v407, 128
        %424 = vxpose.xlu0.b32.cont [2/16] 0.0, 128
        %425 = vxpose.xlu0.b32.cont [3/16] 0.0, 128
        %426 = vxpose.xlu0.b32.cont [4/16] 0.0, 128
        %427 = vxpose.xlu0.b32.cont [5/16] 0.0, 128
        %428 = vxpose.xlu0.b32.cont [6/16] 0.0, 128
        %429 = vxpose.xlu0.b32.cont [7/16] 0.0, 128
        %430 = vxpose.xlu0.b32.cont [8/16] 0.0, 128
        %431 = vxpose.xlu0.b32.cont [9/16] 0.0, 128
        %432 = vxpose.xlu0.b32.cont [10/16] 0.0, 128
        %433 = vxpose.xlu0.b32.cont [11/16] 0.0, 128
        %434 = vxpose.xlu0.b32.cont [12/16] 0.0, 128
        %435 = vxpose.xlu0.b32.cont [13/16] 0.0, 128
        %436 = vxpose.xlu0.b32.cont [14/16] 0.0, 128
        %437 = vxpose.xlu0.b32.cont [15/16] 0.0, 128
        %438 = vxpose.xlu0.b32.end [16/16] 0.0, 128
        %v439 = vpop.trf.xlu0
        %v440 = vpop.trf.xlu0
        %v441 = vpop.trf.xlu0
        %v442 = vpop.trf.xlu0
        %v443 = vpop.trf.xlu0
        %v444 = vpop.trf.xlu0
        %v445 = vpop.trf.xlu0
        %v446 = vpop.trf.xlu0
        %v447 = vpop.trf.xlu0
        %v448 = vpop.trf.xlu0
        %v449 = vpop.trf.xlu0
        %v450 = vpop.trf.xlu0
        %v451 = vpop.trf.xlu0
        %v452 = vpop.trf.xlu0
        %v453 = vpop.trf.xlu0
        %v454 = vpop.trf.xlu0
        %455 = vxpose.xlu0.b32.start [1/16] %v409, 128
        %456 = vxpose.xlu0.b32.cont [2/16] 0.0, 128
        %457 = vxpose.xlu0.b32.cont [3/16] 0.0, 128
        %458 = vxpose.xlu0.b32.cont [4/16] 0.0, 128
        %459 = vxpose.xlu0.b32.cont [5/16] 0.0, 128
        %460 = vxpose.xlu0.b32.cont [6/16] 0.0, 128
        %461 = vxpose.xlu0.b32.cont [7/16] 0.0, 128
        %462 = vxpose.xlu0.b32.cont [8/16] 0.0, 128
        %463 = vxpose.xlu0.b32.cont [9/16] 0.0, 128
        %464 = vxpose.xlu0.b32.cont [10/16] 0.0, 128
        %465 = vxpose.xlu0.b32.cont [11/16] 0.0, 128
        %466 = vxpose.xlu0.b32.cont [12/16] 0.0, 128
        %467 = vxpose.xlu0.b32.cont [13/16] 0.0, 128
        %468 = vxpose.xlu0.b32.cont [14/16] 0.0, 128
        %469 = vxpose.xlu0.b32.cont [15/16] 0.0, 128
        %470 = vxpose.xlu0.b32.end [16/16] 0.0, 128
        %v471 = vpop.trf.xlu0
        %v472 = vpop.trf.xlu0
        %v473 = vpop.trf.xlu0
        %v474 = vpop.trf.xlu0
        %v475 = vpop.trf.xlu0
        %v476 = vpop.trf.xlu0
        %v477 = vpop.trf.xlu0
        %v478 = vpop.trf.xlu0
        %v479 = vpop.trf.xlu0
        %v480 = vpop.trf.xlu0
        %v481 = vpop.trf.xlu0
        %v482 = vpop.trf.xlu0
        %v483 = vpop.trf.xlu0
        %v484 = vpop.trf.xlu0
        %v485 = vpop.trf.xlu0
        %v486 = vpop.trf.xlu0
        %vm487 = vcmask 64512
        %v489 = vsel %vm487, %v439, 0
        %v492 = vsel %vm487, %v440, 0
        %v495 = vsel %vm487, %v441, 0
        %v498 = vsel %vm487, %v442, 0
        %v501 = vsel %vm487, %v443, 0
        %v504 = vsel %vm487, %v444, 0
        %v507 = vsel %vm487, %v445, 0
        %v510 = vsel %vm487, %v446, 0
        %v513 = vsel %vm487, %v447, 0
        %v516 = vsel %vm487, %v448, 0
        %v519 = vsel %vm487, %v449, 0
        %v522 = vsel %vm487, %v450, 0
        %v525 = vsel %vm487, %v451, 0
        %v528 = vsel %vm487, %v452, 0
        %v531 = vsel %vm487, %v453, 0
        %v534 = vsel %vm487, %v454, 0
        %v537 = vsel %vm487, %v471, 0
        %v540 = vsel %vm487, %v472, 0
        %v543 = vsel %vm487, %v473, 0
        %v546 = vsel %vm487, %v474, 0
        %v549 = vsel %vm487, %v475, 0
        %v552 = vsel %vm487, %v476, 0
        %v555 = vsel %vm487, %v477, 0
        %v558 = vsel %vm487, %v478, 0
        %v561 = vsel %vm487, %v479, 0
        %v564 = vsel %vm487, %v480, 0
        %v567 = vsel %vm487, %v481, 0
        %v570 = vsel %vm487, %v482, 0
        %v573 = vsel %vm487, %v483, 0
        %v576 = vsel %vm487, %v484, 0
        %v579 = vsel %vm487, %v485, 0
        %v582 = vsel %vm487, %v486, 0
        %584 = vmatprep.subr.mxu0 0.0
        %585 = vmatpush1.msra.mxu0 0.0
        %586 = vmatprep.subr.mxu0 0.0
        %587 = vmatpush1.msra.mxu0 0.0
        %588 = vmatprep.subr.mxu0 0.0
        %589 = vmatpush1.msra.mxu0 0.0
        %590 = vmatprep.subr.mxu0 0.0
        %591 = vmatpush1.msra.mxu0 0.0
        %592 = vmatprep.subr.mxu0 0.0
        %593 = vmatpush1.msra.mxu0 0.0
        %594 = vmatprep.subr.mxu0 0.0
        %595 = vmatpush1.msra.mxu0 0.0
        %596 = vmatprep.subr.mxu0 0.0
        %597 = vmatpush1.msra.mxu0 0.0
        %598 = vmatprep.subr.mxu0 0.0
        %599 = vmatpush1.msra.mxu0 0.0
        %600 = vmatprep.subr.mxu0 0.0
        %601 = vmatpush1.msra.mxu0 0.0
        %602 = vmatprep.subr.mxu0 0.0
        %603 = vmatpush1.msra.mxu0 0.0
        %604 = vmatprep.subr.mxu0 0.0
        %605 = vmatpush1.msra.mxu0 0.0
        %606 = vmatprep.subr.mxu0 0.0
        %607 = vmatpush1.msra.mxu0 0.0
        %608 = vmatprep.subr.mxu0 0.0
        %609 = vmatpush1.msra.mxu0 0.0
        %610 = vmatprep.subr.mxu0 0.0
        %611 = vmatpush1.msra.mxu0 0.0
        %612 = vmatprep.subr.mxu0 0.0
        %613 = vmatpush1.msra.mxu0 0.0
        %614 = vmatprep.subr.mxu0 %v415
        %615 = vmatpush1.msra.mxu0 %v413
        %616 = vmatprep.subr.mxu0 0.0
        %617 = vmatpush2.msra.mxu0 0.0
        %618 = vmatprep.subr.mxu0 0.0
        %619 = vmatpush2.msra.mxu0 0.0
        %620 = vmatprep.subr.mxu0 0.0
        %621 = vmatpush2.msra.mxu0 0.0
        %622 = vmatprep.subr.mxu0 0.0
        %623 = vmatpush2.msra.mxu0 0.0
        %624 = vmatprep.subr.mxu0 0.0
        %625 = vmatpush2.msra.mxu0 0.0
        %626 = vmatprep.subr.mxu0 0.0
        %627 = vmatpush2.msra.mxu0 0.0
        %628 = vmatprep.subr.mxu0 0.0
        %629 = vmatpush2.msra.mxu0 0.0
        %630 = vmatprep.subr.mxu0 0.0
        %631 = vmatpush2.msra.mxu0 0.0
        %632 = vmatprep.subr.mxu0 0.0
        %633 = vmatpush2.msra.mxu0 0.0
        %634 = vmatprep.subr.mxu0 0.0
        %635 = vmatpush2.msra.mxu0 0.0
        %636 = vmatprep.subr.mxu0 0.0
        %637 = vmatpush2.msra.mxu0 0.0
        %638 = vmatprep.subr.mxu0 0.0
        %639 = vmatpush2.msra.mxu0 0.0
        %640 = vmatprep.subr.mxu0 0.0
        %641 = vmatpush2.msra.mxu0 0.0
        %642 = vmatprep.subr.mxu0 0.0
        %643 = vmatpush2.msra.mxu0 0.0
        %644 = vmatprep.subr.mxu0 0.0
        %645 = vmatpush2.msra.mxu0 0.0
        %646 = vmatprep.subr.mxu0 0.0
        %647 = vmatpush2.msra.mxu0 0.0
        %648 = vmatprep.mubr.f32.mxu0 0.0
        %649 = vmatmul.mubr.f32.gmra.mxu0 %v489
        %v650 = vpop.f32.mrf.mxu0
        %v651 = vadd.f32 0.0, %v650
        %v652 = vpop.f32.mrf.mxu0
        %v653 = vadd.f32 0.0, %v652
        %654 = vmatprep.mubr.f32.mxu0 0.0
        %655 = vmatmul.mubr.f32.gmra.mxu0 %v492
        %v656 = vpop.f32.mrf.mxu0
        %v657 = vadd.f32 0.0, %v656
        %v658 = vpop.f32.mrf.mxu0
        %v659 = vadd.f32 0.0, %v658
        %660 = vmatprep.mubr.f32.mxu0 0.0
        %661 = vmatmul.mubr.f32.gmra.mxu0 %v495
        %v662 = vpop.f32.mrf.mxu0
        %v663 = vadd.f32 0.0, %v662
        %v664 = vpop.f32.mrf.mxu0
        %v665 = vadd.f32 0.0, %v664
        %666 = vmatprep.mubr.f32.mxu0 0.0
        %667 = vmatmul.mubr.f32.gmra.mxu0 %v498
        %v668 = vpop.f32.mrf.mxu0
        %v669 = vadd.f32 0.0, %v668
        %v670 = vpop.f32.mrf.mxu0
        %v671 = vadd.f32 0.0, %v670
        %672 = vmatprep.mubr.f32.mxu0 0.0
        %673 = vmatmul.mubr.f32.gmra.mxu0 %v501
        %v674 = vpop.f32.mrf.mxu0
        %v675 = vadd.f32 0.0, %v674
        %v676 = vpop.f32.mrf.mxu0
        %v677 = vadd.f32 0.0, %v676
        %678 = vmatprep.mubr.f32.mxu0 0.0
        %679 = vmatmul.mubr.f32.gmra.mxu0 %v504
        %v680 = vpop.f32.mrf.mxu0
        %v681 = vadd.f32 0.0, %v680
        %v682 = vpop.f32.mrf.mxu0
        %v683 = vadd.f32 0.0, %v682
        %684 = vmatprep.mubr.f32.mxu0 0.0
        %685 = vmatmul.mubr.f32.gmra.mxu0 %v507
        %v686 = vpop.f32.mrf.mxu0
        %v687 = vadd.f32 0.0, %v686
        %v688 = vpop.f32.mrf.mxu0
        %v689 = vadd.f32 0.0, %v688
        %690 = vmatprep.mubr.f32.mxu0 0.0
        %691 = vmatmul.mubr.f32.gmra.mxu0 %v510
        %v692 = vpop.f32.mrf.mxu0
        %v693 = vadd.f32 0.0, %v692
        %v694 = vpop.f32.mrf.mxu0
        %v695 = vadd.f32 0.0, %v694
        %696 = vmatprep.mubr.f32.mxu0 0.0
        %697 = vmatmul.mubr.f32.gmra.mxu0 %v513
        %v698 = vpop.f32.mrf.mxu0
        %v699 = vadd.f32 0.0, %v698
        %v700 = vpop.f32.mrf.mxu0
        %v701 = vadd.f32 0.0, %v700
        %702 = vmatprep.mubr.f32.mxu0 0.0
        %703 = vmatmul.mubr.f32.gmra.mxu0 %v516
        %v704 = vpop.f32.mrf.mxu0
        %v705 = vadd.f32 0.0, %v704
        %v706 = vpop.f32.mrf.mxu0
        %v707 = vadd.f32 0.0, %v706
        %708 = vmatprep.mubr.f32.mxu0 0.0
        %709 = vmatmul.mubr.f32.gmra.mxu0 %v519
        %v710 = vpop.f32.mrf.mxu0
        %v711 = vadd.f32 0.0, %v710
        %v712 = vpop.f32.mrf.mxu0
        %v713 = vadd.f32 0.0, %v712
        %714 = vmatprep.mubr.f32.mxu0 0.0
        %715 = vmatmul.mubr.f32.gmra.mxu0 %v522
        %v716 = vpop.f32.mrf.mxu0
        %v717 = vadd.f32 0.0, %v716
        %v718 = vpop.f32.mrf.mxu0
        %v719 = vadd.f32 0.0, %v718
        %720 = vmatprep.mubr.f32.mxu0 0.0
        %721 = vmatmul.mubr.f32.gmra.mxu0 %v525
        %v722 = vpop.f32.mrf.mxu0
        %v723 = vadd.f32 0.0, %v722
        %v724 = vpop.f32.mrf.mxu0
        %v725 = vadd.f32 0.0, %v724
        %726 = vmatprep.mubr.f32.mxu0 0.0
        %727 = vmatmul.mubr.f32.gmra.mxu0 %v528
        %v728 = vpop.f32.mrf.mxu0
        %v729 = vadd.f32 0.0, %v728
        %v730 = vpop.f32.mrf.mxu0
        %v731 = vadd.f32 0.0, %v730
        %732 = vmatprep.mubr.f32.mxu0 0.0
        %733 = vmatmul.mubr.f32.gmra.mxu0 %v531
        %v734 = vpop.f32.mrf.mxu0
        %v735 = vadd.f32 0.0, %v734
        %v736 = vpop.f32.mrf.mxu0
        %v737 = vadd.f32 0.0, %v736
        %738 = vmatprep.mubr.f32.mxu0 0.0
        %739 = vmatmul.mubr.f32.gmra.mxu0 %v534
        %v740 = vpop.f32.mrf.mxu0
        %v741 = vadd.f32 0.0, %v740
        %v742 = vpop.f32.mrf.mxu0
        %v743 = vadd.f32 0.0, %v742
        %744 = vmatprep.mubr.f32.mxu0 0.0
        %745 = vmatmul.mubr.f32.gmra.mxu0 %v537
        %v746 = vpop.f32.mrf.mxu0
        %v747 = vadd.f32 0.0, %v746
        %v748 = vpop.f32.mrf.mxu0
        %v749 = vadd.f32 0.0, %v748
        %750 = vmatprep.mubr.f32.mxu0 0.0
        %751 = vmatmul.mubr.f32.gmra.mxu0 %v540
        %v752 = vpop.f32.mrf.mxu0
        %v753 = vadd.f32 0.0, %v752
        %v754 = vpop.f32.mrf.mxu0
        %v755 = vadd.f32 0.0, %v754
        %756 = vmatprep.mubr.f32.mxu0 0.0
        %757 = vmatmul.mubr.f32.gmra.mxu0 %v543
        %v758 = vpop.f32.mrf.mxu0
        %v759 = vadd.f32 0.0, %v758
        %v760 = vpop.f32.mrf.mxu0
        %v761 = vadd.f32 0.0, %v760
        %762 = vmatprep.mubr.f32.mxu0 0.0
        %763 = vmatmul.mubr.f32.gmra.mxu0 %v546
        %v764 = vpop.f32.mrf.mxu0
        %v765 = vadd.f32 0.0, %v764
        %v766 = vpop.f32.mrf.mxu0
        %v767 = vadd.f32 0.0, %v766
        %768 = vmatprep.mubr.f32.mxu0 0.0
        %769 = vmatmul.mubr.f32.gmra.mxu0 %v549
        %v770 = vpop.f32.mrf.mxu0
        %v771 = vadd.f32 0.0, %v770
        %v772 = vpop.f32.mrf.mxu0
        %v773 = vadd.f32 0.0, %v772
        %774 = vmatprep.mubr.f32.mxu0 0.0
        %775 = vmatmul.mubr.f32.gmra.mxu0 %v552
        %v776 = vpop.f32.mrf.mxu0
        %v777 = vadd.f32 0.0, %v776
        %v778 = vpop.f32.mrf.mxu0
        %v779 = vadd.f32 0.0, %v778
        %780 = vmatprep.mubr.f32.mxu0 0.0
        %781 = vmatmul.mubr.f32.gmra.mxu0 %v555
        %v782 = vpop.f32.mrf.mxu0
        %v783 = vadd.f32 0.0, %v782
        %v784 = vpop.f32.mrf.mxu0
        %v785 = vadd.f32 0.0, %v784
        %786 = vmatprep.mubr.f32.mxu0 0.0
        %787 = vmatmul.mubr.f32.gmra.mxu0 %v558
        %v788 = vpop.f32.mrf.mxu0
        %v789 = vadd.f32 0.0, %v788
        %v790 = vpop.f32.mrf.mxu0
        %v791 = vadd.f32 0.0, %v790
        %792 = vmatprep.mubr.f32.mxu0 0.0
        %793 = vmatmul.mubr.f32.gmra.mxu0 %v561
        %v794 = vpop.f32.mrf.mxu0
        %v795 = vadd.f32 0.0, %v794
        %v796 = vpop.f32.mrf.mxu0
        %v797 = vadd.f32 0.0, %v796
        %798 = vmatprep.mubr.f32.mxu0 0.0
        %799 = vmatmul.mubr.f32.gmra.mxu0 %v564
        %v800 = vpop.f32.mrf.mxu0
        %v801 = vadd.f32 0.0, %v800
        %v802 = vpop.f32.mrf.mxu0
        %v803 = vadd.f32 0.0, %v802
        %804 = vmatprep.mubr.f32.mxu0 0.0
        %805 = vmatmul.mubr.f32.gmra.mxu0 %v567
        %v806 = vpop.f32.mrf.mxu0
        %v807 = vadd.f32 0.0, %v806
        %v808 = vpop.f32.mrf.mxu0
        %v809 = vadd.f32 0.0, %v808
        %810 = vmatprep.mubr.f32.mxu0 0.0
        %811 = vmatmul.mubr.f32.gmra.mxu0 %v570
        %v812 = vpop.f32.mrf.mxu0
        %v813 = vadd.f32 0.0, %v812
        %v814 = vpop.f32.mrf.mxu0
        %v815 = vadd.f32 0.0, %v814
        %816 = vmatprep.mubr.f32.mxu0 0.0
        %817 = vmatmul.mubr.f32.gmra.mxu0 %v573
        %v818 = vpop.f32.mrf.mxu0
        %v819 = vadd.f32 0.0, %v818
        %v820 = vpop.f32.mrf.mxu0
        %v821 = vadd.f32 0.0, %v820
        %822 = vmatprep.mubr.f32.mxu0 0.0
        %823 = vmatmul.mubr.f32.gmra.mxu0 %v576
        %v824 = vpop.f32.mrf.mxu0
        %v825 = vadd.f32 0.0, %v824
        %v826 = vpop.f32.mrf.mxu0
        %v827 = vadd.f32 0.0, %v826
        %828 = vmatprep.mubr.f32.mxu0 0.0
        %829 = vmatmul.mubr.f32.gmra.mxu0 %v579
        %v830 = vpop.f32.mrf.mxu0
        %v831 = vadd.f32 0.0, %v830
        %v832 = vpop.f32.mrf.mxu0
        %v833 = vadd.f32 0.0, %v832
        %834 = vmatprep.mubr.f32.mxu0 0.0
        %835 = vmatmul.mubr.f32.gmra.mxu0 %v582
        %v836 = vpop.f32.mrf.mxu0
        %v837 = vadd.f32 0.0, %v836
        %v838 = vpop.f32.mrf.mxu0
        %v839 = vadd.f32 0.0, %v838
        %840 = vdwg.mxu0
        %v841 = vmax.f32 %v651, %v653
        %842 = vmax.xlane.f32.xlu0 %v841
        %v843 = vpop.xlane.xlu0 %842
        %v844 = vmax.f32 %v657, %v659
        %845 = vmax.xlane.f32.xlu0 %v844
        %v846 = vpop.xlane.xlu0 %845
        %v847 = vmax.f32 %v663, %v665
        %848 = vmax.xlane.f32.xlu0 %v847
        %v849 = vpop.xlane.xlu0 %848
        %v850 = vmax.f32 %v669, %v671
        %851 = vmax.xlane.f32.xlu0 %v850
        %v852 = vpop.xlane.xlu0 %851
        %v853 = vmax.f32 %v675, %v677
        %854 = vmax.xlane.f32.xlu0 %v853
        %v855 = vpop.xlane.xlu0 %854
        %v856 = vmax.f32 %v681, %v683
        %857 = vmax.xlane.f32.xlu0 %v856
        %v858 = vpop.xlane.xlu0 %857
        %v859 = vmax.f32 %v687, %v689
        %860 = vmax.xlane.f32.xlu0 %v859
        %v861 = vpop.xlane.xlu0 %860
        %v862 = vmax.f32 %v693, %v695
        %863 = vmax.xlane.f32.xlu0 %v862
        %v864 = vpop.xlane.xlu0 %863
        %v865 = vmax.f32 %v699, %v701
        %866 = vmax.xlane.f32.xlu0 %v865
        %v867 = vpop.xlane.xlu0 %866
        %v868 = vmax.f32 %v705, %v707
        %869 = vmax.xlane.f32.xlu0 %v868
        %v870 = vpop.xlane.xlu0 %869
        %v871 = vmax.f32 %v711, %v713
        %872 = vmax.xlane.f32.xlu0 %v871
        %v873 = vpop.xlane.xlu0 %872
        %v874 = vmax.f32 %v717, %v719
        %875 = vmax.xlane.f32.xlu0 %v874
        %v876 = vpop.xlane.xlu0 %875
        %v877 = vmax.f32 %v723, %v725
        %878 = vmax.xlane.f32.xlu0 %v877
        %v879 = vpop.xlane.xlu0 %878
        %v880 = vmax.f32 %v729, %v731
        %881 = vmax.xlane.f32.xlu0 %v880
        %v882 = vpop.xlane.xlu0 %881
        %v883 = vmax.f32 %v735, %v737
        %884 = vmax.xlane.f32.xlu0 %v883
        %v885 = vpop.xlane.xlu0 %884
        %v886 = vmax.f32 %v741, %v743
        %887 = vmax.xlane.f32.xlu0 %v886
        %v888 = vpop.xlane.xlu0 %887
        %v889 = vmax.f32 %v747, %v749
        %890 = vmax.xlane.f32.xlu0 %v889
        %v891 = vpop.xlane.xlu0 %890
        %v892 = vmax.f32 %v753, %v755
        %893 = vmax.xlane.f32.xlu0 %v892
        %v894 = vpop.xlane.xlu0 %893
        %v895 = vmax.f32 %v759, %v761
        %896 = vmax.xlane.f32.xlu0 %v895
        %v897 = vpop.xlane.xlu0 %896
        %v898 = vmax.f32 %v765, %v767
        %899 = vmax.xlane.f32.xlu0 %v898
        %v900 = vpop.xlane.xlu0 %899
        %v901 = vmax.f32 %v771, %v773
        %902 = vmax.xlane.f32.xlu0 %v901
        %v903 = vpop.xlane.xlu0 %902
        %v904 = vmax.f32 %v777, %v779
        %905 = vmax.xlane.f32.xlu0 %v904
        %v906 = vpop.xlane.xlu0 %905
        %v907 = vmax.f32 %v783, %v785
        %908 = vmax.xlane.f32.xlu0 %v907
        %v909 = vpop.xlane.xlu0 %908
        %v910 = vmax.f32 %v789, %v791
        %911 = vmax.xlane.f32.xlu0 %v910
        %v912 = vpop.xlane.xlu0 %911
        %v913 = vmax.f32 %v795, %v797
        %914 = vmax.xlane.f32.xlu0 %v913
        %v915 = vpop.xlane.xlu0 %914
        %v916 = vmax.f32 %v801, %v803
        %917 = vmax.xlane.f32.xlu0 %v916
        %v918 = vpop.xlane.xlu0 %917
        %v919 = vmax.f32 %v807, %v809
        %920 = vmax.xlane.f32.xlu0 %v919
        %v921 = vpop.xlane.xlu0 %920
        %v922 = vmax.f32 %v813, %v815
        %923 = vmax.xlane.f32.xlu0 %v922
        %v924 = vpop.xlane.xlu0 %923
        %v925 = vmax.f32 %v819, %v821
        %926 = vmax.xlane.f32.xlu0 %v925
        %v927 = vpop.xlane.xlu0 %926
        %v928 = vmax.f32 %v825, %v827
        %929 = vmax.xlane.f32.xlu0 %v928
        %v930 = vpop.xlane.xlu0 %929
        %v931 = vmax.f32 %v831, %v833
        %932 = vmax.xlane.f32.xlu0 %v931
        %v933 = vpop.xlane.xlu0 %932
        %v934 = vmax.f32 %v837, %v839
        %935 = vmax.xlane.f32.xlu0 %v934
        %v936 = vpop.xlane.xlu0 %935
        %v937 = vsub.f32 %v651, %v843
        %v938 = vsub.f32 %v653, %v843
        %v939 = vsub.f32 %v657, %v846
        %v940 = vsub.f32 %v659, %v846
        %v941 = vsub.f32 %v663, %v849
        %v942 = vsub.f32 %v665, %v849
        %v943 = vsub.f32 %v669, %v852
        %v944 = vsub.f32 %v671, %v852
        %v945 = vsub.f32 %v675, %v855
        %v946 = vsub.f32 %v677, %v855
        %v947 = vsub.f32 %v681, %v858
        %v948 = vsub.f32 %v683, %v858
        %v949 = vsub.f32 %v687, %v861
        %v950 = vsub.f32 %v689, %v861
        %v951 = vsub.f32 %v693, %v864
        %v952 = vsub.f32 %v695, %v864
        %v953 = vsub.f32 %v699, %v867
        %v954 = vsub.f32 %v701, %v867
        %v955 = vsub.f32 %v705, %v870
        %v956 = vsub.f32 %v707, %v870
        %v957 = vsub.f32 %v711, %v873
        %v958 = vsub.f32 %v713, %v873
        %v959 = vsub.f32 %v717, %v876
        %v960 = vsub.f32 %v719, %v876
        %v961 = vsub.f32 %v723, %v879
        %v962 = vsub.f32 %v725, %v879
        %v963 = vsub.f32 %v729, %v882
        %v964 = vsub.f32 %v731, %v882
        %v965 = vsub.f32 %v735, %v885
        %v966 = vsub.f32 %v737, %v885
        %v967 = vsub.f32 %v741, %v888
        %v968 = vsub.f32 %v743, %v888
        %v969 = vsub.f32 %v747, %v891
        %v970 = vsub.f32 %v749, %v891
        %v971 = vsub.f32 %v753, %v894
        %v972 = vsub.f32 %v755, %v894
        %v973 = vsub.f32 %v759, %v897
        %v974 = vsub.f32 %v761, %v897
        %v975 = vsub.f32 %v765, %v900
        %v976 = vsub.f32 %v767, %v900
        %v977 = vsub.f32 %v771, %v903
        %v978 = vsub.f32 %v773, %v903
        %v979 = vsub.f32 %v777, %v906
        %v980 = vsub.f32 %v779, %v906
        %v981 = vsub.f32 %v783, %v909
        %v982 = vsub.f32 %v785, %v909
        %v983 = vsub.f32 %v789, %v912
        %v984 = vsub.f32 %v791, %v912
        %v985 = vsub.f32 %v795, %v915
        %v986 = vsub.f32 %v797, %v915
        %v987 = vsub.f32 %v801, %v918
        %v988 = vsub.f32 %v803, %v918
        %v989 = vsub.f32 %v807, %v921
        %v990 = vsub.f32 %v809, %v921
        %v991 = vsub.f32 %v813, %v924
        %v992 = vsub.f32 %v815, %v924
        %v993 = vsub.f32 %v819, %v927
        %v994 = vsub.f32 %v821, %v927
        %v995 = vsub.f32 %v825, %v930
        %v996 = vsub.f32 %v827, %v930
        %v997 = vsub.f32 %v831, %v933
        %v998 = vsub.f32 %v833, %v933
        %v999 = vsub.f32 %v837, %v936
        %v1000 = vsub.f32 %v839, %v936
        %v1001 = vmul.f32 %v937, 1.442695
        %v1002 = vpow.pop %v1001
        %v1003 = vmul.f32 %v938, 1.442695
        %v1004 = vpow.pop %v1003
        %v1005 = vmul.f32 %v939, 1.442695
        %v1006 = vpow.pop %v1005
        %v1007 = vmul.f32 %v940, 1.442695
        %v1008 = vpow.pop %v1007
        %v1009 = vmul.f32 %v941, 1.442695
        %v1010 = vpow.pop %v1009
        %v1011 = vmul.f32 %v942, 1.442695
        %v1012 = vpow.pop %v1011
        %v1013 = vmul.f32 %v943, 1.442695
        %v1014 = vpow.pop %v1013
        %v1015 = vmul.f32 %v944, 1.442695
        %v1016 = vpow.pop %v1015
        %v1017 = vmul.f32 %v945, 1.442695
        %v1018 = vpow.pop %v1017
        %v1019 = vmul.f32 %v946, 1.442695
        %v1020 = vpow.pop %v1019
        %v1021 = vmul.f32 %v947, 1.442695
        %v1022 = vpow.pop %v1021
        %v1023 = vmul.f32 %v948, 1.442695
        %v1024 = vpow.pop %v1023
        %v1025 = vmul.f32 %v949, 1.442695
        %v1026 = vpow.pop %v1025
        %v1027 = vmul.f32 %v950, 1.442695
        %v1028 = vpow.pop %v1027
        %v1029 = vmul.f32 %v951, 1.442695
        %v1030 = vpow.pop %v1029
        %v1031 = vmul.f32 %v952, 1.442695
        %v1032 = vpow.pop %v1031
        %v1033 = vmul.f32 %v953, 1.442695
        %v1034 = vpow.pop %v1033
        %v1035 = vmul.f32 %v954, 1.442695
        %v1036 = vpow.pop %v1035
        %v1037 = vmul.f32 %v955, 1.442695
        %v1038 = vpow.pop %v1037
        %v1039 = vmul.f32 %v956, 1.442695
        %v1040 = vpow.pop %v1039
        %v1041 = vmul.f32 %v957, 1.442695
        %v1042 = vpow.pop %v1041
        %v1043 = vmul.f32 %v958, 1.442695
        %v1044 = vpow.pop %v1043
        %v1045 = vmul.f32 %v959, 1.442695
        %v1046 = vpow.pop %v1045
        %v1047 = vmul.f32 %v960, 1.442695
        %v1048 = vpow.pop %v1047
        %v1049 = vmul.f32 %v961, 1.442695
        %v1050 = vpow.pop %v1049
        %v1051 = vmul.f32 %v962, 1.442695
        %v1052 = vpow.pop %v1051
        %v1053 = vmul.f32 %v963, 1.442695
        %v1054 = vpow.pop %v1053
        %v1055 = vmul.f32 %v964, 1.442695
        %v1056 = vpow.pop %v1055
        %v1057 = vmul.f32 %v965, 1.442695
        %v1058 = vpow.pop %v1057
        %v1059 = vmul.f32 %v966, 1.442695
        %v1060 = vpow.pop %v1059
        %v1061 = vmul.f32 %v967, 1.442695
        %v1062 = vpow.pop %v1061
        %v1063 = vmul.f32 %v968, 1.442695
        %v1064 = vpow.pop %v1063
        %v1065 = vmul.f32 %v969, 1.442695
        %v1066 = vpow.pop %v1065
        %v1067 = vmul.f32 %v970, 1.442695
        %v1068 = vpow.pop %v1067
        %v1069 = vmul.f32 %v971, 1.442695
        %v1070 = vpow.pop %v1069
        %v1071 = vmul.f32 %v972, 1.442695
        %v1072 = vpow.pop %v1071
        %v1073 = vmul.f32 %v973, 1.442695
        %v1074 = vpow.pop %v1073
        %v1075 = vmul.f32 %v974, 1.442695
        %v1076 = vpow.pop %v1075
        %v1077 = vmul.f32 %v975, 1.442695
        %v1078 = vpow.pop %v1077
        %v1079 = vmul.f32 %v976, 1.442695
        %v1080 = vpow.pop %v1079
        %v1081 = vmul.f32 %v977, 1.442695
        %v1082 = vpow.pop %v1081
        %v1083 = vmul.f32 %v978, 1.442695
        %v1084 = vpow.pop %v1083
        %v1085 = vmul.f32 %v979, 1.442695
        %v1086 = vpow.pop %v1085
        %v1087 = vmul.f32 %v980, 1.442695
        %v1088 = vpow.pop %v1087
        %v1089 = vmul.f32 %v981, 1.442695
        %v1090 = vpow.pop %v1089
        %v1091 = vmul.f32 %v982, 1.442695
        %v1092 = vpow.pop %v1091
        %v1093 = vmul.f32 %v983, 1.442695
        %v1094 = vpow.pop %v1093
        %v1095 = vmul.f32 %v984, 1.442695
        %v1096 = vpow.pop %v1095
        %v1097 = vmul.f32 %v985, 1.442695
        %v1098 = vpow.pop %v1097
        %v1099 = vmul.f32 %v986, 1.442695
        %v1100 = vpow.pop %v1099
        %v1101 = vmul.f32 %v987, 1.442695
        %v1102 = vpow.pop %v1101
        %v1103 = vmul.f32 %v988, 1.442695
        %v1104 = vpow.pop %v1103
        %v1105 = vmul.f32 %v989, 1.442695
        %v1106 = vpow.pop %v1105
        %v1107 = vmul.f32 %v990, 1.442695
        %v1108 = vpow.pop %v1107
        %v1109 = vmul.f32 %v991, 1.442695
        %v1110 = vpow.pop %v1109
        %v1111 = vmul.f32 %v992, 1.442695
        %v1112 = vpow.pop %v1111
        %v1113 = vmul.f32 %v993, 1.442695
        %v1114 = vpow.pop %v1113
        %v1115 = vmul.f32 %v994, 1.442695
        %v1116 = vpow.pop %v1115
        %v1117 = vmul.f32 %v995, 1.442695
        %v1118 = vpow.pop %v1117
        %v1119 = vmul.f32 %v996, 1.442695
        %v1120 = vpow.pop %v1119
        %v1121 = vmul.f32 %v997, 1.442695
        %v1122 = vpow.pop %v1121
        %v1123 = vmul.f32 %v998, 1.442695
        %v1124 = vpow.pop %v1123
        %v1125 = vmul.f32 %v999, 1.442695
        %v1126 = vpow.pop %v1125
        %v1127 = vmul.f32 %v1000, 1.442695
        %v1128 = vpow.pop %v1127
        %v1129 = vadd.f32 %v1002, %v1004
        %1130 = vadd.xlane.f32.xlu0 %v1129
        %v1131 = vpop.xlane.xlu0 %1130
        %v1132 = vadd.f32 %v1006, %v1008
        %1133 = vadd.xlane.f32.xlu0 %v1132
        %v1134 = vpop.xlane.xlu0 %1133
        %v1135 = vadd.f32 %v1010, %v1012
        %1136 = vadd.xlane.f32.xlu0 %v1135
        %v1137 = vpop.xlane.xlu0 %1136
        %v1138 = vadd.f32 %v1014, %v1016
        %1139 = vadd.xlane.f32.xlu0 %v1138
        %v1140 = vpop.xlane.xlu0 %1139
        %v1141 = vadd.f32 %v1018, %v1020
        %1142 = vadd.xlane.f32.xlu0 %v1141
        %v1143 = vpop.xlane.xlu0 %1142
        %v1144 = vadd.f32 %v1022, %v1024
        %1145 = vadd.xlane.f32.xlu0 %v1144
        %v1146 = vpop.xlane.xlu0 %1145
        %v1147 = vadd.f32 %v1026, %v1028
        %1148 = vadd.xlane.f32.xlu0 %v1147
        %v1149 = vpop.xlane.xlu0 %1148
        %v1150 = vadd.f32 %v1030, %v1032
        %1151 = vadd.xlane.f32.xlu0 %v1150
        %v1152 = vpop.xlane.xlu0 %1151
        %v1153 = vadd.f32 %v1034, %v1036
        %1154 = vadd.xlane.f32.xlu0 %v1153
        %v1155 = vpop.xlane.xlu0 %1154
        %v1156 = vadd.f32 %v1038, %v1040
        %1157 = vadd.xlane.f32.xlu0 %v1156
        %v1158 = vpop.xlane.xlu0 %1157
        %v1159 = vadd.f32 %v1042, %v1044
        %1160 = vadd.xlane.f32.xlu0 %v1159
        %v1161 = vpop.xlane.xlu0 %1160
        %v1162 = vadd.f32 %v1046, %v1048
        %1163 = vadd.xlane.f32.xlu0 %v1162
        %v1164 = vpop.xlane.xlu0 %1163
        %v1165 = vadd.f32 %v1050, %v1052
        %1166 = vadd.xlane.f32.xlu0 %v1165
        %v1167 = vpop.xlane.xlu0 %1166
        %v1168 = vadd.f32 %v1054, %v1056
        %1169 = vadd.xlane.f32.xlu0 %v1168
        %v1170 = vpop.xlane.xlu0 %1169
        %v1171 = vadd.f32 %v1058, %v1060
        %1172 = vadd.xlane.f32.xlu0 %v1171
        %v1173 = vpop.xlane.xlu0 %1172
        %v1174 = vadd.f32 %v1062, %v1064
        %1175 = vadd.xlane.f32.xlu0 %v1174
        %v1176 = vpop.xlane.xlu0 %1175
        %v1177 = vadd.f32 %v1066, %v1068
        %1178 = vadd.xlane.f32.xlu0 %v1177
        %v1179 = vpop.xlane.xlu0 %1178
        %v1180 = vadd.f32 %v1070, %v1072
        %1181 = vadd.xlane.f32.xlu0 %v1180
        %v1182 = vpop.xlane.xlu0 %1181
        %v1183 = vadd.f32 %v1074, %v1076
        %1184 = vadd.xlane.f32.xlu0 %v1183
        %v1185 = vpop.xlane.xlu0 %1184
        %v1186 = vadd.f32 %v1078, %v1080
        %1187 = vadd.xlane.f32.xlu0 %v1186
        %v1188 = vpop.xlane.xlu0 %1187
        %v1189 = vadd.f32 %v1082, %v1084
        %1190 = vadd.xlane.f32.xlu0 %v1189
        %v1191 = vpop.xlane.xlu0 %1190
        %v1192 = vadd.f32 %v1086, %v1088
        %1193 = vadd.xlane.f32.xlu0 %v1192
        %v1194 = vpop.xlane.xlu0 %1193
        %v1195 = vadd.f32 %v1090, %v1092
        %1196 = vadd.xlane.f32.xlu0 %v1195
        %v1197 = vpop.xlane.xlu0 %1196
        %v1198 = vadd.f32 %v1094, %v1096
        %1199 = vadd.xlane.f32.xlu0 %v1198
        %v1200 = vpop.xlane.xlu0 %1199
        %v1201 = vadd.f32 %v1098, %v1100
        %1202 = vadd.xlane.f32.xlu0 %v1201
        %v1203 = vpop.xlane.xlu0 %1202
        %v1204 = vadd.f32 %v1102, %v1104
        %1205 = vadd.xlane.f32.xlu0 %v1204
        %v1206 = vpop.xlane.xlu0 %1205
        %v1207 = vadd.f32 %v1106, %v1108
        %1208 = vadd.xlane.f32.xlu0 %v1207
        %v1209 = vpop.xlane.xlu0 %1208
        %v1210 = vadd.f32 %v1110, %v1112
        %1211 = vadd.xlane.f32.xlu0 %v1210
        %v1212 = vpop.xlane.xlu0 %1211
        %v1213 = vadd.f32 %v1114, %v1116
        %1214 = vadd.xlane.f32.xlu0 %v1213
        %v1215 = vpop.xlane.xlu0 %1214
        %v1216 = vadd.f32 %v1118, %v1120
        %1217 = vadd.xlane.f32.xlu0 %v1216
        %v1218 = vpop.xlane.xlu0 %1217
        %v1219 = vadd.f32 %v1122, %v1124
        %1220 = vadd.xlane.f32.xlu0 %v1219
        %v1221 = vpop.xlane.xlu0 %1220
        %v1222 = vadd.f32 %v1126, %v1128
        %1223 = vadd.xlane.f32.xlu0 %v1222
        %v1224 = vpop.xlane.xlu0 %1223
        %v1225 = vrcp.pop %v1131
        %v1226 = vrcp.pop %v1134
        %v1227 = vrcp.pop %v1137
        %v1228 = vrcp.pop %v1140
        %v1229 = vrcp.pop %v1143
        %v1230 = vrcp.pop %v1146
        %v1231 = vrcp.pop %v1149
        %v1232 = vrcp.pop %v1152
        %v1233 = vrcp.pop %v1155
        %v1234 = vrcp.pop %v1158
        %v1235 = vrcp.pop %v1161
        %v1236 = vrcp.pop %v1164
        %v1237 = vrcp.pop %v1167
        %v1238 = vrcp.pop %v1170
        %v1239 = vrcp.pop %v1173
        %v1240 = vrcp.pop %v1176
        %v1241 = vrcp.pop %v1179
        %v1242 = vrcp.pop %v1182
        %v1243 = vrcp.pop %v1185
        %v1244 = vrcp.pop %v1188
        %v1245 = vrcp.pop %v1191
        %v1246 = vrcp.pop %v1194
        %v1247 = vrcp.pop %v1197
        %v1248 = vrcp.pop %v1200
        %v1249 = vrcp.pop %v1203
        %v1250 = vrcp.pop %v1206
        %v1251 = vrcp.pop %v1209
        %v1252 = vrcp.pop %v1212
        %v1253 = vrcp.pop %v1215
        %v1254 = vrcp.pop %v1218
        %v1255 = vrcp.pop %v1221
        %v1256 = vrcp.pop %v1224
        %v1257 = vmul.f32 %v1002, %v1225
        %v1258 = vmul.f32 %v1004, %v1225
        %v1259 = vmul.f32 %v1006, %v1226
        %v1260 = vmul.f32 %v1008, %v1226
        %v1261 = vmul.f32 %v1010, %v1227
        %v1262 = vmul.f32 %v1012, %v1227
        %v1263 = vmul.f32 %v1014, %v1228
        %v1264 = vmul.f32 %v1016, %v1228
        %v1265 = vmul.f32 %v1018, %v1229
        %v1266 = vmul.f32 %v1020, %v1229
        %v1267 = vmul.f32 %v1022, %v1230
        %v1268 = vmul.f32 %v1024, %v1230
        %v1269 = vmul.f32 %v1026, %v1231
        %v1270 = vmul.f32 %v1028, %v1231
        %v1271 = vmul.f32 %v1030, %v1232
        %v1272 = vmul.f32 %v1032, %v1232
        %v1273 = vmul.f32 %v1034, %v1233
        %v1274 = vmul.f32 %v1036, %v1233
        %v1275 = vmul.f32 %v1038, %v1234
        %v1276 = vmul.f32 %v1040, %v1234
        %v1277 = vmul.f32 %v1042, %v1235
        %v1278 = vmul.f32 %v1044, %v1235
        %v1279 = vmul.f32 %v1046, %v1236
        %v1280 = vmul.f32 %v1048, %v1236
        %v1281 = vmul.f32 %v1050, %v1237
        %v1282 = vmul.f32 %v1052, %v1237
        %v1283 = vmul.f32 %v1054, %v1238
        %v1284 = vmul.f32 %v1056, %v1238
        %v1285 = vmul.f32 %v1058, %v1239
        %v1286 = vmul.f32 %v1060, %v1239
        %v1287 = vmul.f32 %v1062, %v1240
        %v1288 = vmul.f32 %v1064, %v1240
        %v1289 = vmul.f32 %v1066, %v1241
        %v1290 = vmul.f32 %v1068, %v1241
        %v1291 = vmul.f32 %v1070, %v1242
        %v1292 = vmul.f32 %v1072, %v1242
        %v1293 = vmul.f32 %v1074, %v1243
        %v1294 = vmul.f32 %v1076, %v1243
        %v1295 = vmul.f32 %v1078, %v1244
        %v1296 = vmul.f32 %v1080, %v1244
        %v1297 = vmul.f32 %v1082, %v1245
        %v1298 = vmul.f32 %v1084, %v1245
        %v1299 = vmul.f32 %v1086, %v1246
        %v1300 = vmul.f32 %v1088, %v1246
        %v1301 = vmul.f32 %v1090, %v1247
        %v1302 = vmul.f32 %v1092, %v1247
        %v1303 = vmul.f32 %v1094, %v1248
        %v1304 = vmul.f32 %v1096, %v1248
        %v1305 = vmul.f32 %v1098, %v1249
        %v1306 = vmul.f32 %v1100, %v1249
        %v1307 = vmul.f32 %v1102, %v1250
        %v1308 = vmul.f32 %v1104, %v1250
        %v1309 = vmul.f32 %v1106, %v1251
        %v1310 = vmul.f32 %v1108, %v1251
        %v1311 = vmul.f32 %v1110, %v1252
        %v1312 = vmul.f32 %v1112, %v1252
        %v1313 = vmul.f32 %v1114, %v1253
        %v1314 = vmul.f32 %v1116, %v1253
        %v1315 = vmul.f32 %v1118, %v1254
        %v1316 = vmul.f32 %v1120, %v1254
        %v1317 = vmul.f32 %v1122, %v1255
        %v1318 = vmul.f32 %v1124, %v1255
        %v1319 = vmul.f32 %v1126, %v1256
        %v1320 = vmul.f32 %v1128, %v1256
        %1321 = vst [vmem:[%s276] sm:$0xff] %v1257
        %1322 = vst [vmem:[%s276 + $0x8] sm:$0xff] %v1258
        %1323 = vst [vmem:[%s276 + $0x10] sm:$0xff] %v1259
        %1324 = vst [vmem:[%s276 + $0x18] sm:$0xff] %v1260
        %1325 = vst [vmem:[%s276 + $0x20] sm:$0xff] %v1261
        %1326 = vst [vmem:[%s276 + $0x28] sm:$0xff] %v1262
        %1327 = vst [vmem:[%s276 + $0x30] sm:$0xff] %v1263
        %1328 = vst [vmem:[%s276 + $0x38] sm:$0xff] %v1264
        %1329 = vst [vmem:[%s276 + $0x40] sm:$0xff] %v1265
        %1330 = vst [vmem:[%s276 + $0x48] sm:$0xff] %v1266
        %1331 = vst [vmem:[%s276 + $0x50] sm:$0xff] %v1267
        %1332 = vst [vmem:[%s276 + $0x58] sm:$0xff] %v1268
        %1333 = vst [vmem:[%s276 + $0x60] sm:$0xff] %v1269
        %1334 = vst [vmem:[%s276 + $0x68] sm:$0xff] %v1270
        %1335 = vst [vmem:[%s276 + $0x70] sm:$0xff] %v1271
        %1336 = vst [vmem:[%s276 + $0x78] sm:$0xff] %v1272
        %1337 = vst [vmem:[%s276 + $0x80] sm:$0xff] %v1273
        %1338 = vst [vmem:[%s276 + $0x88] sm:$0xff] %v1274
        %1339 = vst [vmem:[%s276 + $0x90] sm:$0xff] %v1275
        %1340 = vst [vmem:[%s276 + $0x98] sm:$0xff] %v1276
        %1341 = vst [vmem:[%s276 + $0xa0] sm:$0xff] %v1277
        %1342 = vst [vmem:[%s276 + $0xa8] sm:$0xff] %v1278
        %1343 = vst [vmem:[%s276 + $0xb0] sm:$0xff] %v1279
        %1344 = vst [vmem:[%s276 + $0xb8] sm:$0xff] %v1280
        %1345 = vst [vmem:[%s276 + $0xc0] sm:$0xff] %v1281
        %1346 = vst [vmem:[%s276 + $0xc8] sm:$0xff] %v1282
        %1347 = vst [vmem:[%s276 + $0xd0] sm:$0xff] %v1283
        %1348 = vst [vmem:[%s276 + $0xd8] sm:$0xff] %v1284
        %1349 = vst [vmem:[%s276 + $0xe0] sm:$0xff] %v1285
        %1350 = vst [vmem:[%s276 + $0xe8] sm:$0xff] %v1286
        %1351 = vst [vmem:[%s276 + $0xf0] sm:$0xff] %v1287
        %1352 = vst [vmem:[%s276 + $0xf8] sm:$0xff] %v1288
        %1353 = vst [vmem:[%s276 + $0x100] sm:$0xff] %v1289
        %1354 = vst [vmem:[%s276 + $0x108] sm:$0xff] %v1290
        %1355 = vst [vmem:[%s276 + $0x110] sm:$0xff] %v1291
        %1356 = vst [vmem:[%s276 + $0x118] sm:$0xff] %v1292
        %1357 = vst [vmem:[%s276 + $0x120] sm:$0xff] %v1293
        %1358 = vst [vmem:[%s276 + $0x128] sm:$0xff] %v1294
        %1359 = vst [vmem:[%s276 + $0x130] sm:$0xff] %v1295
        %1360 = vst [vmem:[%s276 + $0x138] sm:$0xff] %v1296
        %1361 = vst [vmem:[%s276 + $0x140] sm:$0xff] %v1297
        %1362 = vst [vmem:[%s276 + $0x148] sm:$0xff] %v1298
        %1363 = vst [vmem:[%s276 + $0x150] sm:$0xff] %v1299
        %1364 = vst [vmem:[%s276 + $0x158] sm:$0xff] %v1300
        %1365 = vst [vmem:[%s276 + $0x160] sm:$0xff] %v1301
        %1366 = vst [vmem:[%s276 + $0x168] sm:$0xff] %v1302
        %1367 = vst [vmem:[%s276 + $0x170] sm:$0xff] %v1303
        %1368 = vst [vmem:[%s276 + $0x178] sm:$0xff] %v1304
        %1369 = vst [vmem:[%s276 + $0x180] sm:$0xff] %v1305
        %1370 = vst [vmem:[%s276 + $0x188] sm:$0xff] %v1306
        %1371 = vst [vmem:[%s276 + $0x190] sm:$0xff] %v1307
        %1372 = vst [vmem:[%s276 + $0x198] sm:$0xff] %v1308
        %1373 = vst [vmem:[%s276 + $0x1a0] sm:$0xff] %v1309
        %1374 = vst [vmem:[%s276 + $0x1a8] sm:$0xff] %v1310
        %1375 = vst [vmem:[%s276 + $0x1b0] sm:$0xff] %v1311
        %1376 = vst [vmem:[%s276 + $0x1b8] sm:$0xff] %v1312
        %1377 = vst [vmem:[%s276 + $0x1c0] sm:$0xff] %v1313
        %1378 = vst [vmem:[%s276 + $0x1c8] sm:$0xff] %v1314
        %1379 = vst [vmem:[%s276 + $0x1d0] sm:$0xff] %v1315
        %1380 = vst [vmem:[%s276 + $0x1d8] sm:$0xff] %v1316
        %1381 = vst [vmem:[%s276 + $0x1e0] sm:$0xff] %v1317
        %1382 = vst [vmem:[%s276 + $0x1e8] sm:$0xff] %v1318
        %1383 = vst [vmem:[%s276 + $0x1f0] sm:$0xff] %v1319
        %1384 = vst [vmem:[%s276 + $0x1f8] sm:$0xff] %v1320
        %1385 = vmatprep.subr.mxu0 %v1288
        %1386 = vmatpush1.xpose.msra.mxu0 %v1287
        %1387 = vmatprep.subr.mxu0 %v1286
        %1388 = vmatpush1.xpose.msra.mxu0 %v1285
        %1389 = vmatprep.subr.mxu0 %v1284
        %1390 = vmatpush1.xpose.msra.mxu0 %v1283
        %1391 = vmatprep.subr.mxu0 %v1282
        %1392 = vmatpush1.xpose.msra.mxu0 %v1281
        %1393 = vmatprep.subr.mxu0 %v1280
        %1394 = vmatpush1.xpose.msra.mxu0 %v1279
        %1395 = vmatprep.subr.mxu0 %v1278
        %1396 = vmatpush1.xpose.msra.mxu0 %v1277
        %1397 = vmatprep.subr.mxu0 %v1276
        %1398 = vmatpush1.xpose.msra.mxu0 %v1275
        %1399 = vmatprep.subr.mxu0 %v1274
        %1400 = vmatpush1.xpose.msra.mxu0 %v1273
        %1401 = vmatprep.subr.mxu0 %v1272
        %1402 = vmatpush1.xpose.msra.mxu0 %v1271
        %1403 = vmatprep.subr.mxu0 %v1270
        %1404 = vmatpush1.xpose.msra.mxu0 %v1269
        %1405 = vmatprep.subr.mxu0 %v1268
        %1406 = vmatpush1.xpose.msra.mxu0 %v1267
        %1407 = vmatprep.subr.mxu0 %v1266
        %1408 = vmatpush1.xpose.msra.mxu0 %v1265
        %1409 = vmatprep.subr.mxu0 %v1264
        %1410 = vmatpush1.xpose.msra.mxu0 %v1263
        %1411 = vmatprep.subr.mxu0 %v1262
        %1412 = vmatpush1.xpose.msra.mxu0 %v1261
        %1413 = vmatprep.subr.mxu0 %v1260
        %1414 = vmatpush1.xpose.msra.mxu0 %v1259
        %1415 = vmatprep.subr.mxu0 %v1258
        %1416 = vmatpush1.xpose.msra.mxu0 %v1257
        %1417 = vmatprep.subr.mxu0 %v1320
        %1418 = vmatpush2.xpose.msra.mxu0 %v1319
        %1419 = vmatprep.subr.mxu0 %v1318
        %1420 = vmatpush2.xpose.msra.mxu0 %v1317
        %1421 = vmatprep.subr.mxu0 %v1316
        %1422 = vmatpush2.xpose.msra.mxu0 %v1315
        %1423 = vmatprep.subr.mxu0 %v1314
        %1424 = vmatpush2.xpose.msra.mxu0 %v1313
        %1425 = vmatprep.subr.mxu0 %v1312
        %1426 = vmatpush2.xpose.msra.mxu0 %v1311
        %1427 = vmatprep.subr.mxu0 %v1310
        %1428 = vmatpush2.xpose.msra.mxu0 %v1309
        %1429 = vmatprep.subr.mxu0 %v1308
        %1430 = vmatpush2.xpose.msra.mxu0 %v1307
        %1431 = vmatprep.subr.mxu0 %v1306
        %1432 = vmatpush2.xpose.msra.mxu0 %v1305
        %1433 = vmatprep.subr.mxu0 %v1304
        %1434 = vmatpush2.xpose.msra.mxu0 %v1303
        %1435 = vmatprep.subr.mxu0 %v1302
        %1436 = vmatpush2.xpose.msra.mxu0 %v1301
        %1437 = vmatprep.subr.mxu0 %v1300
        %1438 = vmatpush2.xpose.msra.mxu0 %v1299
        %1439 = vmatprep.subr.mxu0 %v1298
        %1440 = vmatpush2.xpose.msra.mxu0 %v1297
        %1441 = vmatprep.subr.mxu0 %v1296
        %1442 = vmatpush2.xpose.msra.mxu0 %v1295
        %1443 = vmatprep.subr.mxu0 %v1294
        %1444 = vmatpush2.xpose.msra.mxu0 %v1293
        %1445 = vmatprep.subr.mxu0 %v1292
        %1446 = vmatpush2.xpose.msra.mxu0 %v1291
        %1447 = vmatprep.subr.mxu0 %v1290
        %1448 = vmatpush2.xpose.msra.mxu0 %v1289
        %1449 = vmatprep.mubr.f32.mxu0 %v421
        %1450 = vmatmul.mubr.f32.gmra.mxu0 %v419
        %v1451 = vpop.f32.mrf.mxu0
        %v1452 = vadd.f32 0.0, %v1451
        %v1453 = vpop.f32.mrf.mxu0
        %v1454 = vadd.f32 0.0, %v1453
        %1455 = vdwg.mxu0
        %s1456 = smul.u32 %s26, 8
        %s1457 = sshra.s32 %s1456, 3
        %s1458 = sand.u32 %s1456, 7
        %s1459 = smul.u32 %s1457, 2
        %s1460 = smul.addr %s1459, 8
        %s1461 = scalar_lea.vmem %s281, %s1460
        %v1462 = vld [vmem:[%s1461] sm:$0xff]
        %v1463 = vld [vmem:[%s1461 + $0x8] sm:$0xff]
        %s1464 = sld [smem:[#allocation2]]
        %v1465 = vstv %s1464
        %v1466 = vmul.f32 %v1465, %v1452
        %v1467 = vmul.f32 %v1465, %v1454
        %v1468 = vadd.f32 %v1466, %v1462
        %v1469 = vadd.f32 %v1467, %v1463
        %1470 = vst [vmem:[%s300] sm:$0xff] %v1468
        %1471 = vst [vmem:[%s300 + $0x8] sm:$0xff] %v1469
        %p1472 = scmp.lt.s32.totalorder %s25, 1
        %s1473 = scalar_select %p1472, %s25, 1
        %p1474 = scmp.lt.s32.totalorder %s26, 3
        %s1475 = scalar_select %p1474, %s26, 3
        %s1476 = smul.addr %s1475, 2
        %s1477 = smul.addr %s1473, 8
        %s1478 = sadd.s32 %s1476, %s1477
        %s1479 = smul.addr %s1478, 8
        %s1480 = scalar_lea.vmem %s4, %s1479
        %s1481 = sand.u32 %s170, 1
        %s1482 = scalar_lea.sflag [#allocation4], %s1481
        %s1483 = sand.u32 %s170, 1
        %s1484 = smul.addr %s1483, 512
        %s1485 = scalar_lea.vmem [#allocation3], %s1484
        // Predicated region
        $region37: #{mhsa_forward.1} parent=35 // pred_check
          %p1486 = pneg %p152
        $region38: #{mhsa_forward.1} parent=35 // pred_check_branch
          %1488 = sbr.rel (%p1486) target = $region40
        $region39: #{mhsa_forward.1} parent=35 // pred_region
          _
        $region40: #{mhsa_forward.1} parent=35 // pred_fallthru
          _
        // Predicated region
        $region41: #{mhsa_forward.1} parent=35 // pred_check
          %p1489 = pneg %p180
        $region42: #{mhsa_forward.1} parent=35 // pred_check_branch
          %1491 = sbr.rel (%p1489) target = $region44
        $region43: #{mhsa_forward.1} parent=35 // pred_region
          %s1493 = ssub.s32 8192, 8192
          %1494 = vsyncadd %s1482, %s1493
          %s1495 = smul.addr %s26, 64
          %s1496 = smul.addr %s25, 256
          %s1497 = sadd.s32 %s1495, %s1496
          %s1498 = smul.addr %s1497, 128
          %s1499 = scalar_lea.hbm %s5, %s1498
          %s1500 = sshll.u32 %s1485, 4
          %s1501 = int_to_ptr.vmem [resolvable:$true] %s1500
          %1506 = dma.vmem_to_hbm [thread:$0]  %s1501, 8192, %s1499, %s1482, 256, 256, 16
        $region44: #{mhsa_forward.1} parent=35 // pred_fallthru
          _
      $region36: #{mhsa_forward.1} parent=5 // pred_fallthru
        _
      %p1507 = scmp.le.s32.totalorder 2, %s16
      // Predicated region
      $region45: #{mhsa_forward.1} parent=5 // pred_check
        %p1508 = pneg %p1507
      $region46: #{mhsa_forward.1} parent=5 // pred_check_branch
        %1510 = sbr.rel (%p1508) target = $region48
      $region47: #{mhsa_forward.1} parent=5 // pred_region
        %s1511 = ssub.s32 %s16, 2
        // Predicated region
        $region49: #{mhsa_forward.1} parent=47 // pred_check
          %p1512 = pneg %p158
        $region50: #{mhsa_forward.1} parent=47 // pred_check_branch
          %1514 = sbr.rel (%p1512) target = $region52
        $region51: #{mhsa_forward.1} parent=47 // pred_region
          %p1515 = scmp.lt.s32.totalorder %s27, 1
          %s1516 = scalar_select %p1515, %s27, 1
          %p1517 = scmp.lt.s32.totalorder %s28, 3
          %s1518 = scalar_select %p1517, %s28, 3
          %s1519 = smul.addr %s1518, 2
          %s1520 = smul.addr %s1516, 8
          %s1521 = sadd.s32 %s1519, %s1520
          %s1522 = smul.addr %s1521, 8
          %s1523 = scalar_lea.vmem %s4, %s1522
        $region52: #{mhsa_forward.1} parent=47 // pred_fallthru
          _
        // Predicated region
        $region53: #{mhsa_forward.1} parent=47 // pred_check
          %p1524 = pneg %p186
        $region54: #{mhsa_forward.1} parent=47 // pred_check_branch
          %1526 = sbr.rel (%p1524) target = $region56
        $region55: #{mhsa_forward.1} parent=47 // pred_region
          %s1527 = sand.u32 %s171, 1
          %s1528 = scalar_lea.sflag [#allocation4], %s1527
          %s1529 = sand.u32 %s171, 1
          %s1530 = smul.addr %s1529, 512
          %s1531 = scalar_lea.vmem [#allocation3], %s1530
          %1532 = dma.done %s1528, 8192
        $region56: #{mhsa_forward.1} parent=47 // pred_fallthru
          _
      $region48: #{mhsa_forward.1} parent=5 // pred_fallthru
        _
    $region6: #{mhsa_forward.1} parent=1 // loop_footer
      %s20 = sadd.s32 1, %s16
    $region7: #{mhsa_forward.1} parent=1 // loop_footer_branch
      %15 = sbr.rel target = $region3
    $region8: #{mhsa_forward.1} parent=1 // loop_exit
      _
    %1533 = vsyncpa [#allocation4], 1
    %s1534 = scalar_lea.sflag [#allocation4], 1
    %1535 = vsyncpa %s1534, 1

</llo_original>
